<compile_context>
chip_gen: v5e
topology: v5e:2x2
jax: 0.10.0
libtpu: 0.0.40
codegen_flags: <defaults>
</compile_context>

<pallas_src>
import functools

import numpy as np
import jax
import jax.numpy as jnp
from jax.experimental import pallas as pl
from jax.experimental.pallas import tpu as pltpu

N_CLASSES = 10


# ----------------------------------------------------------------------------
# Fused kernel.  Per grid step it processes a block of `ipb` images.
# Row layout inside a block: r = b*28 + i (conv1), b*12 + i (later stages),
# lane layouts: conv1 co*25+j, pool1/conv2-in c*12+j, conv2 co*10+j,
# pool2 co*5+j.  Rows i>=25 (conv1) / i>=10 (conv2) of each per-image block
# are junk and are provably never read by the downstream selections.
# ----------------------------------------------------------------------------
def _fused_forward_kernel(x_ref, w1_ref, c1_ref, w2_ref, d2_ref, rs_ref,
                          wl1f_ref, wl2t_ref, wlo_ref, b_ref, o_ref,
                          s_a1, s_w1, s_p1, s_a2, s_wp, *, ipb):
    f32 = jnp.float32
    bf16 = jnp.bfloat16
    r28 = 28 * ipb
    r12 = 12 * ipb

    # ---- conv1 (1 -> 8, 4x4, valid) + ReLU: a single bf16 MXU matmul --------
    a1 = jnp.dot(x_ref[...], w1_ref[...], preferred_element_type=f32)
    a1 = jnp.maximum(a1 + b_ref[:, pl.ds(0, 200)], 0.0)            # (28*ipb, 200)
    s_a1[...] = a1

    # ---- pool1 (3x3, stride 2): 25x25 -> 12x12 ------------------------------
    # lane-window max via lane-offset scratch reads, one selection matmul,
    # then row-window max via sublane-offset reads, one selection matmul.
    wl = jnp.maximum(jnp.maximum(s_a1[:, pl.ds(0, 198)],
                                 s_a1[:, pl.ds(1, 198)]),
                     s_a1[:, pl.ds(2, 198)])                        # (28*ipb, 198)
    s_w1[...] = jnp.dot(wl, c1_ref[...].astype(f32),
                        preferred_element_type=f32)                 # (28*ipb, 96)
    rmax = jnp.maximum(jnp.maximum(s_w1[pl.ds(0, r28 - 2), :],
                                   s_w1[pl.ds(1, r28 - 2), :]),
                       s_w1[pl.ds(2, r28 - 2), :])                  # (28*ipb-2, 96)
    r1 = rs_ref[pl.ds(0, r12), pl.ds(0, r28 - 2)].astype(f32)
    s_p1[...] = jnp.dot(r1, rmax, preferred_element_type=f32)       # (12*ipb, 96)

    # ---- conv2 (8 -> 16, 3x3, valid) + ReLU ---------------------------------
    # kj folded into banded bf16 weights; ki via sublane-offset scratch reads.
    sh0 = s_p1[pl.ds(0, r12 - 2), :].astype(bf16)
    sh1 = s_p1[pl.ds(1, r12 - 2), :].astype(bf16)
    sh2 = s_p1[pl.ds(2, r12 - 2), :].astype(bf16)
    acc2 = (jnp.dot(sh0, w2_ref[0], preferred_element_type=f32)
            + jnp.dot(sh1, w2_ref[1], preferred_element_type=f32)
            + jnp.dot(sh2, w2_ref[2], preferred_element_type=f32))  # (12*ipb-2, 160)
    s_a2[...] = jnp.maximum(acc2 + b_ref[:, pl.ds(256, 160)], 0.0)

    # ---- pool2 (2x2, stride 2): 10x10 -> 5x5 --------------------------------
    wlv2 = jnp.maximum(s_a2[:, pl.ds(0, 159)], s_a2[:, pl.ds(1, 159)])
    s_wp[...] = jnp.dot(wlv2, d2_ref[...].astype(f32),
                        preferred_element_type=f32)                 # (12*ipb-2, 80)
    rmax2 = jnp.maximum(s_wp[pl.ds(0, r12 - 3), :],
                        s_wp[pl.ds(1, r12 - 3), :])                 # (12*ipb-3, 80)

    # ---- NCHW flatten folded into l1: per spatial-row gather + bf16 matmul --
    h1 = None
    for io in range(5):
        g = rs_ref[pl.ds(r12 + io * ipb, ipb), pl.ds(0, r12 - 3)].astype(f32)
        p2_io = jnp.dot(g, rmax2, preferred_element_type=f32)       # (ipb, 80)
        t = jnp.dot(p2_io.astype(bf16), wl1f_ref[io],
                    preferred_element_type=f32)                     # (ipb, 256)
        h1 = t if h1 is None else h1 + t
    h1 = jnp.maximum(h1 + b_ref[:, pl.ds(512, 256)], 0.0)

    # ---- FC stack (Dropout(0.3) == eval-mode identity) ----------------------
    h2 = jnp.maximum(jnp.dot(h1.astype(bf16), wl2t_ref[...],
                             preferred_element_type=f32)
                     + b_ref[:, pl.ds(768, 128)], 0.0)              # (ipb, 128)
    o_ref[...] = (jnp.dot(h2.astype(bf16), wlo_ref[...],
                          preferred_element_type=f32)
                  + b_ref[:, pl.ds(896, 128)])                      # (ipb, 128)


# ----------------------------------------------------------------------------
# One-time parameter preparation (outside the jitted forward).
# ----------------------------------------------------------------------------
def prepare_params(params, images_per_block):
    ipb = int(images_per_block)
    w1 = np.asarray(params["w_conv1"], np.float32)   # (8, 1, 4, 4)
    b1 = np.asarray(params["b_conv1"], np.float32)
    w2 = np.asarray(params["w_conv2"], np.float32)   # (16, 8, 3, 3)
    b2 = np.asarray(params["b_conv2"], np.float32)
    wl1 = np.asarray(params["w_l1"], np.float32)     # (256, 400)
    bl1 = np.asarray(params["b_l1"], np.float32)
    wl2 = np.asarray(params["w_l2"], np.float32)     # (128, 256)
    bl2 = np.asarray(params["b_l2"], np.float32)
    wlo = np.asarray(params["w_lo"], np.float32)     # (10, 128)
    blo = np.asarray(params["b_lo"], np.float32)

    # conv1: all 16 kernel offsets folded into one banded matrix (112, 200).
    W1 = np.zeros((4 * 28, 8 * 25), np.float32)
    for ki in range(4):
        for kj in range(4):
            for co in range(8):
                for j in range(25):
                    W1[ki * 28 + j + kj, co * 25 + j] = w1[co, 0, ki, kj]

    # conv2: kj folded -> one banded matrix per ki (3, 96, 160).
    W2 = np.zeros((3, 8 * 12, 16 * 10), np.float32)
    for ki in range(3):
        for kj in range(3):
            for c in range(8):
                for co in range(16):
                    for j in range(10):
                        W2[ki, c * 12 + j + kj, co * 10 + j] = w2[co, c, ki, kj]

    # pool1 / pool2 lane selections (single matrices; window max done in-kernel).
    C1 = np.zeros((198, 96), np.float32)
    for co in range(8):
        for jo in range(12):
            C1[co * 25 + 2 * jo, co * 12 + jo] = 1.0
    D2 = np.zeros((159, 80), np.float32)
    for co in range(16):
        for jo in range(5):
            D2[co * 10 + 2 * jo, co * 5 + jo] = 1.0

    # Packed per-block row selections: pool1-row (R1) + pool2-row/flatten gathers.
    rs_rows = 12 * ipb + 5 * ipb
    rs_cols = max(28 * ipb - 2, 12 * ipb - 3)
    ROWSEL = np.zeros((rs_rows, rs_cols), np.float32)
    for b in range(ipb):
        for io in range(12):
            ROWSEL[b * 12 + io, b * 28 + 2 * io] = 1.0              # R1
    for io in range(5):
        for b in range(ipb):
            ROWSEL[12 * ipb + io * ipb + b, b * 12 + 2 * io] = 1.0  # G_io

    # flatten (PyTorch channel-major) folded into l1: (5, 80, 256).
    WL1F = np.zeros((5, 80, 256), np.float32)
    for io in range(5):
        for co in range(16):
            for jo in range(5):
                WL1F[io, co * 5 + jo, :] = wl1[:, co * 25 + io * 5 + jo]

    # Output head padded to 128 lanes -> dense final store.
    WLO = np.zeros((128, 128), np.float32)
    WLO[:, :N_CLASSES] = wlo.T
    BLO = np.zeros((128,), np.float32)
    BLO[:N_CLASSES] = blo

    # Packed biases, 128-lane-aligned segments (f32, exact).
    BIAS = np.zeros((1, 1024), np.float32)
    BIAS[0, 0:200] = np.repeat(b1, 25)
    BIAS[0, 256:416] = np.repeat(b2, 10)
    BIAS[0, 512:768] = bl1
    BIAS[0, 768:896] = bl2
    BIAS[0, 896:1024] = BLO

    bf = lambda a: jnp.asarray(a, jnp.bfloat16)   # 0/1 matrices are exact in bf16
    return dict(
        w1=bf(W1), c1=bf(C1), w2=bf(W2), d2=bf(D2), rowsel=bf(ROWSEL),
        wl1f=bf(WL1F), wl2t=bf(wl2.T), wlo=bf(WLO),
        bias=jnp.asarray(BIAS, jnp.float32),
    )


# ----------------------------------------------------------------------------
# Forward: one pallas_call, batch tiled over a "parallel" grid axis.
# ----------------------------------------------------------------------------
def simple_conv_forward(x_nchw, prepped):
    B = x_nchw.shape[0]
    assert x_nchw.shape[1:] == (1, 28, 28), x_nchw.shape
    ipb = prepped["rowsel"].shape[0] // 17          # images per block (static)
    assert B % ipb == 0, (B, ipb)
    nblk = B // ipb

    # 4 row-shifted copies of the image rows side by side on the lane axis so
    # conv1 becomes a single matmul.  Rows i>=25 of each image are junk.
    x0 = x_nchw.reshape(B * 28, 28).astype(jnp.float32)
    x0 = jnp.pad(x0, ((0, 3), (0, 0)))
    x_cat = jnp.concatenate([x0[ki:ki + 28 * B, :] for ki in range(4)],
                            axis=1).astype(jnp.bfloat16)            # (28B, 112)

    consts = [prepped["w1"], prepped["c1"], prepped["w2"], prepped["d2"],
              prepped["rowsel"], prepped["wl1f"], prepped["wl2t"],
              prepped["wlo"], prepped["bias"]]

    def const_spec(a):
        if a.ndim == 2:
            return pl.BlockSpec(a.shape, lambda g: (0, 0))
        return pl.BlockSpec(a.shape, lambda g: (0, 0, 0))

    kernel = functools.partial(_fused_forward_kernel, ipb=ipb)
    out = pl.pallas_call(
        kernel,
        out_shape=jax.ShapeDtypeStruct((B, 128), jnp.float32),
        grid=(nblk,),
        in_specs=[pl.BlockSpec((28 * ipb, 112), lambda g: (g, 0))]
                 + [const_spec(a) for a in consts],
        out_specs=pl.BlockSpec((ipb, 128), lambda g: (g, 0)),
        scratch_shapes=[
            pltpu.VMEM((28 * ipb, 200), jnp.float32),   # conv1 activations
            pltpu.VMEM((28 * ipb, 96), jnp.float32),    # pool1 lane-max
            pltpu.VMEM((12 * ipb, 96), jnp.float32),    # pool1 output
            pltpu.VMEM((12 * ipb - 2, 160), jnp.float32),  # conv2 activations
            pltpu.VMEM((12 * ipb - 2, 80), jnp.float32),   # pool2 lane-max
        ],
        compiler_params=pltpu.CompilerParams(
            dimension_semantics=("parallel",)),
    )(x_cat, *consts)
    return out[:, :N_CLASSES]


# ----------------------------------------------------------------------------
# Pure NumPy (float64) reference of the PyTorch module, for validation.
# ----------------------------------------------------------------------------
def _numpy_reference(x, params):
    x = np.asarray(x, np.float64)

    def conv(inp, w, b):
        Bn, Cin, H, W = inp.shape
        Cout, _, kh, kw = w.shape
        Ho, Wo = H - kh + 1, W - kw + 1
        out = np.zeros((Bn, Cout, Ho, Wo))
        for ki in range(kh):
            for kj in range(kw):
                patch = inp[:, :, ki:ki + Ho, kj:kj + Wo]
                out += np.einsum("bchw,oc->bohw", patch, w[:, :, ki, kj])
        return out + b[None, :, None, None]

    def maxpool(inp, k, s):
        Bn, C, H, W = inp.shape
        Ho, Wo = (H - k) // s + 1, (W - k) // s + 1
        out = np.full((Bn, C, Ho, Wo), -np.inf)
        for pi in range(k):
            for pj in range(k):
                out = np.maximum(
                    out, inp[:, :, pi:pi + s * (Ho - 1) + 1:s,
                             pj:pj + s * (Wo - 1) + 1:s])
        return out

    w1 = np.asarray(params["w_conv1"], np.float64)
    b1 = np.asarray(params["b_conv1"], np.float64)
    w2 = np.asarray(params["w_conv2"], np.float64)
    b2 = np.asarray(params["b_conv2"], np.float64)

    a = np.maximum(conv(x, w1, b1), 0.0)
    a = maxpool(a, 3, 2)
    a = np.maximum(conv(a, w2, b2), 0.0)
    a = maxpool(a, 2, 2)
    a = a.reshape(x.shape[0], -1)
    a = np.maximum(a @ np.asarray(params["w_l1"], np.float64).T
                   + np.asarray(params["b_l1"], np.float64), 0.0)
    a = np.maximum(a @ np.asarray(params["w_l2"], np.float64).T
                   + np.asarray(params["b_l2"], np.float64), 0.0)
    return a @ np.asarray(params["w_lo"], np.float64).T \
        + np.asarray(params["b_lo"], np.float64)


# ----------------------------------------------------------------------------
# Deterministic parameter init (PyTorch-default-style uniform(-1/sqrt(fan_in)))
# ----------------------------------------------------------------------------
def _uinit(key, shape, fan_in):
    bound = 1.0 / np.sqrt(fan_in)
    return jax.random.uniform(key, shape, jnp.float32, -bound, bound)


def init_params(key):
    ks = jax.random.split(key, 10)
    return {
        "w_conv1": _uinit(ks[0], (8, 1, 4, 4), 1 * 4 * 4),
        "b_conv1": _uinit(ks[1], (8,), 1 * 4 * 4),
        "w_conv2": _uinit(ks[2], (16, 8, 3, 3), 8 * 3 * 3),
        "b_conv2": _uinit(ks[3], (16,), 8 * 3 * 3),
        "w_l1": _uinit(ks[4], (256, 400), 400),
        "b_l1": _uinit(ks[5], (256,), 400),
        "w_l2": _uinit(ks[6], (128, 256), 256),
        "b_l2": _uinit(ks[7], (128,), 256),
        "w_lo": _uinit(ks[8], (N_CLASSES, 128), 128),
        "b_lo": _uinit(ks[9], (N_CLASSES,), 128),
    }


if __name__ == "__main__":
    root = jax.random.PRNGKey(0)
    pkey, xkey = jax.random.split(root)
    params = init_params(pkey)

    # FashionMNIST-shaped input: the Linear(16*5*5, 256) forces H = W = 28.
    B = 2
    x = jax.random.normal(xkey, (B, 1, 28, 28), jnp.float32)

    # One-time constant/weight prep.  For larger batches use images_per_block=8
    # (keeps row-selection constants bounded and gives 8-row-aligned blocks).
    prepped = prepare_params(params, images_per_block=B)

    fwd = jax.jit(simple_conv_forward)
    logits = fwd(x, prepped)
    jax.block_until_ready(logits)

    assert logits.shape == (B, N_CLASSES), logits.shape
    out_np = np.asarray(logits)
    assert np.all(np.isfinite(out_np))

    # bf16 MXU operands (weights + activations at each weight matmul) give
    # ~1e-2-scale absolute error on O(1) logits; 5e-2 catches structural bugs.
    ref = _numpy_reference(x, params)
    max_err = float(np.max(np.abs(out_np - ref)))
    assert np.allclose(out_np, ref, rtol=5e-2, atol=5e-2), f"max_err={max_err}"

    print("KERNEL_OK")
</pallas_src>

<mosaic_0001>
module attributes {stable_mosaic.version = 11 : i64} {
  func.func @_fused_forward_kernel(%arg0: i32, %arg1: memref<56x112xbf16, #tpu.memory_space<vmem>>, %arg2: memref<112x200xbf16, #tpu.memory_space<vmem>>, %arg3: memref<198x96xbf16, #tpu.memory_space<vmem>>, %arg4: memref<3x96x160xbf16, #tpu.memory_space<vmem>>, %arg5: memref<159x80xbf16, #tpu.memory_space<vmem>>, %arg6: memref<34x54xbf16, #tpu.memory_space<vmem>>, %arg7: memref<5x80x256xbf16, #tpu.memory_space<vmem>>, %arg8: memref<256x128xbf16, #tpu.memory_space<vmem>>, %arg9: memref<128x128xbf16, #tpu.memory_space<vmem>>, %arg10: memref<1x1024xf32, #tpu.memory_space<vmem>>, %arg11: memref<2x128xf32, #tpu.memory_space<vmem>>, %arg12: memref<56x200xf32, #tpu.memory_space<vmem>>, %arg13: memref<56x96xf32, #tpu.memory_space<vmem>>, %arg14: memref<24x96xf32, #tpu.memory_space<vmem>>, %arg15: memref<22x160xf32, #tpu.memory_space<vmem>>, %arg16: memref<22x80xf32, #tpu.memory_space<vmem>>) attributes {dimension_semantics = [#tpu.dimension_semantics<parallel>], iteration_bounds = array<i64: 1>, scalar_prefetch = 0 : i64, scratch_operands = 5 : i64, tpu.core_type = #tpu.core_type<tc>, window_params = [{transform_indices = @transform_0, window_bounds = array<i64: 56, 112>}, {pipeline_mode = #tpu.pipeline_mode<synchronous>, transform_indices = @transform_1, window_bounds = array<i64: 112, 200>}, {pipeline_mode = #tpu.pipeline_mode<synchronous>, transform_indices = @transform_2, window_bounds = array<i64: 198, 96>}, {pipeline_mode = #tpu.pipeline_mode<synchronous>, transform_indices = @transform_3, window_bounds = array<i64: 3, 96, 160>}, {pipeline_mode = #tpu.pipeline_mode<synchronous>, transform_indices = @transform_4, window_bounds = array<i64: 159, 80>}, {pipeline_mode = #tpu.pipeline_mode<synchronous>, transform_indices = @transform_5, window_bounds = array<i64: 34, 54>}, {pipeline_mode = #tpu.pipeline_mode<synchronous>, transform_indices = @transform_6, window_bounds = array<i64: 5, 80, 256>}, {pipeline_mode = #tpu.pipeline_mode<synchronous>, transform_indices = @transform_7, window_bounds = array<i64: 256, 128>}, {pipeline_mode = #tpu.pipeline_mode<synchronous>, transform_indices = @transform_8, window_bounds = array<i64: 128, 128>}, {pipeline_mode = #tpu.pipeline_mode<synchronous>, transform_indices = @transform_9, window_bounds = array<i64: 1, 1024>}, {transform_indices = @transform_10, window_bounds = array<i64: 2, 128>}]} {
    %c0 = arith.constant 0 : index
    %c0_0 = arith.constant 0 : index
    %0 = vector.load %arg1[%c0, %c0_0] : memref<56x112xbf16, #tpu.memory_space<vmem>>, vector<56x112xbf16>
    %c0_1 = arith.constant 0 : index
    %c0_2 = arith.constant 0 : index
    %1 = vector.load %arg2[%c0_1, %c0_2] : memref<112x200xbf16, #tpu.memory_space<vmem>>, vector<112x200xbf16>
    %cst = arith.constant dense<0.000000e+00> : vector<56x200xf32>
    %2 = tpu.matmul %0, %1, %cst {dimension_numbers = #tpu.dot_dimension_numbers<[1], [0], [0], [1], [0, 0, 1, 1], [], []>} : vector<56x112xbf16>, vector<112x200xbf16>, vector<56x200xf32> -> vector<56x200xf32>
    %c0_3 = arith.constant 0 : index
    %c0_4 = arith.constant 0 : index
    %3 = vector.load %arg10[%c0_3, %c0_4] : memref<1x1024xf32, #tpu.memory_space<vmem>>, vector<1x200xf32>
    %4 = vector.broadcast %3 : vector<1x200xf32> to vector<56x200xf32>
    %5 = arith.addf %2, %4 : vector<56x200xf32>
    %cst_5 = arith.constant 0.000000e+00 : f32
    %6 = vector.broadcast %cst_5 : f32 to vector<56x200xf32>
    %7 = arith.maximumf %5, %6 : vector<56x200xf32>
    %c0_6 = arith.constant 0 : index
    %c0_7 = arith.constant 0 : index
    %8 = vector.load %arg12[%c0_6, %c0_7] : memref<56x200xf32, #tpu.memory_space<vmem>>, vector<56x200xf32>
    tpu.vector_store %arg12[%c0_6, %c0_7], %7 {strides = array<i32>} : memref<56x200xf32, #tpu.memory_space<vmem>>, vector<56x200xf32>,
    %c0_8 = arith.constant 0 : index
    %c0_9 = arith.constant 0 : index
    %9 = vector.load %arg12[%c0_8, %c0_9] : memref<56x200xf32, #tpu.memory_space<vmem>>, vector<56x198xf32>
    %c0_10 = arith.constant 0 : index
    %c1 = arith.constant 1 : index
    %10 = vector.load %arg12[%c0_10, %c1] : memref<56x200xf32, #tpu.memory_space<vmem>>, vector<56x198xf32>
    %11 = arith.maximumf %9, %10 : vector<56x198xf32>
    %c0_11 = arith.constant 0 : index
    %c2 = arith.constant 2 : index
    %12 = vector.load %arg12[%c0_11, %c2] : memref<56x200xf32, #tpu.memory_space<vmem>>, vector<56x198xf32>
    %13 = arith.maximumf %11, %12 : vector<56x198xf32>
    %c0_12 = arith.constant 0 : index
    %c0_13 = arith.constant 0 : index
    %14 = vector.load %arg3[%c0_12, %c0_13] : memref<198x96xbf16, #tpu.memory_space<vmem>>, vector<198x96xbf16>
    %15 = arith.extf %14 : vector<198x96xbf16> to vector<198x96xf32>
    %cst_14 = arith.constant dense<0.000000e+00> : vector<56x96xf32>
    %16 = tpu.matmul %13, %15, %cst_14 {dimension_numbers = #tpu.dot_dimension_numbers<[1], [0], [0], [1], [0, 0, 1, 1], [], []>} : vector<56x198xf32>, vector<198x96xf32>, vector<56x96xf32> -> vector<56x96xf32>
    %c0_15 = arith.constant 0 : index
    %c0_16 = arith.constant 0 : index
    %17 = vector.load %arg13[%c0_15, %c0_16] : memref<56x96xf32, #tpu.memory_space<vmem>>, vector<56x96xf32>
    tpu.vector_store %arg13[%c0_15, %c0_16], %16 {strides = array<i32>} : memref<56x96xf32, #tpu.memory_space<vmem>>, vector<56x96xf32>,
    %c0_17 = arith.constant 0 : index
    %c0_18 = arith.constant 0 : index
    %18 = vector.load %arg13[%c0_17, %c0_18] : memref<56x96xf32, #tpu.memory_space<vmem>>, vector<54x96xf32>
    %c1_19 = arith.constant 1 : index
    %c0_20 = arith.constant 0 : index
    %19 = vector.load %arg13[%c1_19, %c0_20] : memref<56x96xf32, #tpu.memory_space<vmem>>, vector<54x96xf32>
    %20 = arith.maximumf %18, %19 : vector<54x96xf32>
    %c2_21 = arith.constant 2 : index
    %c0_22 = arith.constant 0 : index
    %21 = vector.load %arg13[%c2_21, %c0_22] : memref<56x96xf32, #tpu.memory_space<vmem>>, vector<54x96xf32>
    %22 = arith.maximumf %20, %21 : vector<54x96xf32>
    %c0_23 = arith.constant 0 : index
    %c0_24 = arith.constant 0 : index
    %23 = vector.load %arg6[%c0_23, %c0_24] : memref<34x54xbf16, #tpu.memory_space<vmem>>, vector<24x54xbf16>
    %24 = arith.extf %23 : vector<24x54xbf16> to vector<24x54xf32>
    %cst_25 = arith.constant dense<0.000000e+00> : vector<24x96xf32>
    %25 = tpu.matmul %24, %22, %cst_25 {dimension_numbers = #tpu.dot_dimension_numbers<[1], [0], [0], [1], [0, 0, 1, 1], [], []>} : vector<24x54xf32>, vector<54x96xf32>, vector<24x96xf32> -> vector<24x96xf32>
    %c0_26 = arith.constant 0 : index
    %c0_27 = arith.constant 0 : index
    %26 = vector.load %arg14[%c0_26, %c0_27] : memref<24x96xf32, #tpu.memory_space<vmem>>, vector<24x96xf32>
    tpu.vector_store %arg14[%c0_26, %c0_27], %25 {strides = array<i32>} : memref<24x96xf32, #tpu.memory_space<vmem>>, vector<24x96xf32>,
    %c0_28 = arith.constant 0 : index
    %c0_29 = arith.constant 0 : index
    %27 = vector.load %arg14[%c0_28, %c0_29] : memref<24x96xf32, #tpu.memory_space<vmem>>, vector<22x96xf32>
    %28 = arith.truncf %27 : vector<22x96xf32> to vector<22x96xbf16>
    %c1_30 = arith.constant 1 : index
    %c0_31 = arith.constant 0 : index
    %29 = vector.load %arg14[%c1_30, %c0_31] : memref<24x96xf32, #tpu.memory_space<vmem>>, vector<22x96xf32>
    %30 = arith.truncf %29 : vector<22x96xf32> to vector<22x96xbf16>
    %c2_32 = arith.constant 2 : index
    %c0_33 = arith.constant 0 : index
    %31 = vector.load %arg14[%c2_32, %c0_33] : memref<24x96xf32, #tpu.memory_space<vmem>>, vector<22x96xf32>
    %32 = arith.truncf %31 : vector<22x96xf32> to vector<22x96xbf16>
    %c0_34 = arith.constant 0 : index
    %c0_35 = arith.constant 0 : index
    %c0_36 = arith.constant 0 : index
    %33 = vector.load %arg4[%c0_34, %c0_35, %c0_36] : memref<3x96x160xbf16, #tpu.memory_space<vmem>>, vector<1x96x160xbf16>
    %34 = vector.shape_cast %33 : vector<1x96x160xbf16> to vector<96x160xbf16>
    %cst_37 = arith.constant dense<0.000000e+00> : vector<22x160xf32>
    %35 = tpu.matmul %28, %34, %cst_37 {dimension_numbers = #tpu.dot_dimension_numbers<[1], [0], [0], [1], [0, 0, 1, 1], [], []>} : vector<22x96xbf16>, vector<96x160xbf16>, vector<22x160xf32> -> vector<22x160xf32>
    %c1_38 = arith.constant 1 : index
    %c0_39 = arith.constant 0 : index
    %c0_40 = arith.constant 0 : index
    %36 = vector.load %arg4[%c1_38, %c0_39, %c0_40] : memref<3x96x160xbf16, #tpu.memory_space<vmem>>, vector<1x96x160xbf16>
    %37 = vector.shape_cast %36 : vector<1x96x160xbf16> to vector<96x160xbf16>
    %cst_41 = arith.constant dense<0.000000e+00> : vector<22x160xf32>
    %38 = tpu.matmul %30, %37, %cst_41 {dimension_numbers = #tpu.dot_dimension_numbers<[1], [0], [0], [1], [0, 0, 1, 1], [], []>} : vector<22x96xbf16>, vector<96x160xbf16>, vector<22x160xf32> -> vector<22x160xf32>
    %39 = arith.addf %35, %38 : vector<22x160xf32>
    %c2_42 = arith.constant 2 : index
    %c0_43 = arith.constant 0 : index
    %c0_44 = arith.constant 0 : index
    %40 = vector.load %arg4[%c2_42, %c0_43, %c0_44] : memref<3x96x160xbf16, #tpu.memory_space<vmem>>, vector<1x96x160xbf16>
    %41 = vector.shape_cast %40 : vector<1x96x160xbf16> to vector<96x160xbf16>
    %cst_45 = arith.constant dense<0.000000e+00> : vector<22x160xf32>
    %42 = tpu.matmul %32, %41, %cst_45 {dimension_numbers = #tpu.dot_dimension_numbers<[1], [0], [0], [1], [0, 0, 1, 1], [], []>} : vector<22x96xbf16>, vector<96x160xbf16>, vector<22x160xf32> -> vector<22x160xf32>
    %43 = arith.addf %39, %42 : vector<22x160xf32>
    %c0_46 = arith.constant 0 : index
    %c256 = arith.constant 256 : index
    %44 = vector.load %arg10[%c0_46, %c256] : memref<1x1024xf32, #tpu.memory_space<vmem>>, vector<1x160xf32>
    %45 = vector.broadcast %44 : vector<1x160xf32> to vector<22x160xf32>
    %46 = arith.addf %43, %45 : vector<22x160xf32>
    %cst_47 = arith.constant 0.000000e+00 : f32
    %47 = vector.broadcast %cst_47 : f32 to vector<22x160xf32>
    %48 = arith.maximumf %46, %47 : vector<22x160xf32>
    %c0_48 = arith.constant 0 : index
    %c0_49 = arith.constant 0 : index
    %49 = vector.load %arg15[%c0_48, %c0_49] : memref<22x160xf32, #tpu.memory_space<vmem>>, vector<22x160xf32>
    tpu.vector_store %arg15[%c0_48, %c0_49], %48 {strides = array<i32>} : memref<22x160xf32, #tpu.memory_space<vmem>>, vector<22x160xf32>,
    %c0_50 = arith.constant 0 : index
    %c0_51 = arith.constant 0 : index
    %50 = vector.load %arg15[%c0_50, %c0_51] : memref<22x160xf32, #tpu.memory_space<vmem>>, vector<22x159xf32>
    %c0_52 = arith.constant 0 : index
    %c1_53 = arith.constant 1 : index
    %51 = vector.load %arg15[%c0_52, %c1_53] : memref<22x160xf32, #tpu.memory_space<vmem>>, vector<22x159xf32>
    %52 = arith.maximumf %50, %51 : vector<22x159xf32>
    %c0_54 = arith.constant 0 : index
    %c0_55 = arith.constant 0 : index
    %53 = vector.load %arg5[%c0_54, %c0_55] : memref<159x80xbf16, #tpu.memory_space<vmem>>, vector<159x80xbf16>
    %54 = arith.extf %53 : vector<159x80xbf16> to vector<159x80xf32>
    %cst_56 = arith.constant dense<0.000000e+00> : vector<22x80xf32>
    %55 = tpu.matmul %52, %54, %cst_56 {dimension_numbers = #tpu.dot_dimension_numbers<[1], [0], [0], [1], [0, 0, 1, 1], [], []>} : vector<22x159xf32>, vector<159x80xf32>, vector<22x80xf32> -> vector<22x80xf32>
    %c0_57 = arith.constant 0 : index
    %c0_58 = arith.constant 0 : index
    %56 = vector.load %arg16[%c0_57, %c0_58] : memref<22x80xf32, #tpu.memory_space<vmem>>, vector<22x80xf32>
    tpu.vector_store %arg16[%c0_57, %c0_58], %55 {strides = array<i32>} : memref<22x80xf32, #tpu.memory_space<vmem>>, vector<22x80xf32>,
    %c0_59 = arith.constant 0 : index
    %c0_60 = arith.constant 0 : index
    %57 = vector.load %arg16[%c0_59, %c0_60] : memref<22x80xf32, #tpu.memory_space<vmem>>, vector<21x80xf32>
    %c1_61 = arith.constant 1 : index
    %c0_62 = arith.constant 0 : index
    %58 = vector.load %arg16[%c1_61, %c0_62] : memref<22x80xf32, #tpu.memory_space<vmem>>, vector<21x80xf32>
    %59 = arith.maximumf %57, %58 : vector<21x80xf32>
    %c24 = arith.constant 24 : index
    %c0_63 = arith.constant 0 : index
    %60 = vector.load %arg6[%c24, %c0_63] : memref<34x54xbf16, #tpu.memory_space<vmem>>, vector<2x21xbf16>
    %61 = arith.extf %60 : vector<2x21xbf16> to vector<2x21xf32>
    %cst_64 = arith.constant dense<0.000000e+00> : vector<2x80xf32>
    %62 = tpu.matmul %61, %59, %cst_64 {dimension_numbers = #tpu.dot_dimension_numbers<[1], [0], [0], [1], [0, 0, 1, 1], [], []>} : vector<2x21xf32>, vector<21x80xf32>, vector<2x80xf32> -> vector<2x80xf32>
    %63 = arith.truncf %62 : vector<2x80xf32> to vector<2x80xbf16>
    %c0_65 = arith.constant 0 : index
    %c0_66 = arith.constant 0 : index
    %c0_67 = arith.constant 0 : index
    %64 = vector.load %arg7[%c0_65, %c0_66, %c0_67] : memref<5x80x256xbf16, #tpu.memory_space<vmem>>, vector<1x80x256xbf16>
    %65 = vector.shape_cast %64 : vector<1x80x256xbf16> to vector<80x256xbf16>
    %cst_68 = arith.constant dense<0.000000e+00> : vector<2x256xf32>
    %66 = tpu.matmul %63, %65, %cst_68 {dimension_numbers = #tpu.dot_dimension_numbers<[1], [0], [0], [1], [0, 0, 1, 1], [], []>} : vector<2x80xbf16>, vector<80x256xbf16>, vector<2x256xf32> -> vector<2x256xf32>
    %c26 = arith.constant 26 : index
    %c0_69 = arith.constant 0 : index
    %67 = vector.load %arg6[%c26, %c0_69] : memref<34x54xbf16, #tpu.memory_space<vmem>>, vector<2x21xbf16>
    %68 = arith.extf %67 : vector<2x21xbf16> to vector<2x21xf32>
    %cst_70 = arith.constant dense<0.000000e+00> : vector<2x80xf32>
    %69 = tpu.matmul %68, %59, %cst_70 {dimension_numbers = #tpu.dot_dimension_numbers<[1], [0], [0], [1], [0, 0, 1, 1], [], []>} : vector<2x21xf32>, vector<21x80xf32>, vector<2x80xf32> -> vector<2x80xf32>
    %70 = arith.truncf %69 : vector<2x80xf32> to vector<2x80xbf16>
    %c1_71 = arith.constant 1 : index
    %c0_72 = arith.constant 0 : index
    %c0_73 = arith.constant 0 : index
    %71 = vector.load %arg7[%c1_71, %c0_72, %c0_73] : memref<5x80x256xbf16, #tpu.memory_space<vmem>>, vector<1x80x256xbf16>
    %72 = vector.shape_cast %71 : vector<1x80x256xbf16> to vector<80x256xbf16>
    %cst_74 = arith.constant dense<0.000000e+00> : vector<2x256xf32>
    %73 = tpu.matmul %70, %72, %cst_74 {dimension_numbers = #tpu.dot_dimension_numbers<[1], [0], [0], [1], [0, 0, 1, 1], [], []>} : vector<2x80xbf16>, vector<80x256xbf16>, vector<2x256xf32> -> vector<2x256xf32>
    %74 = arith.addf %66, %73 : vector<2x256xf32>
    %c28 = arith.constant 28 : index
    %c0_75 = arith.constant 0 : index
    %75 = vector.load %arg6[%c28, %c0_75] : memref<34x54xbf16, #tpu.memory_space<vmem>>, vector<2x21xbf16>
    %76 = arith.extf %75 : vector<2x21xbf16> to vector<2x21xf32>
    %cst_76 = arith.constant dense<0.000000e+00> : vector<2x80xf32>
    %77 = tpu.matmul %76, %59, %cst_76 {dimension_numbers = #tpu.dot_dimension_numbers<[1], [0], [0], [1], [0, 0, 1, 1], [], []>} : vector<2x21xf32>, vector<21x80xf32>, vector<2x80xf32> -> vector<2x80xf32>
    %78 = arith.truncf %77 : vector<2x80xf32> to vector<2x80xbf16>
    %c2_77 = arith.constant 2 : index
    %c0_78 = arith.constant 0 : index
    %c0_79 = arith.constant 0 : index
    %79 = vector.load %arg7[%c2_77, %c0_78, %c0_79] : memref<5x80x256xbf16, #tpu.memory_space<vmem>>, vector<1x80x256xbf16>
    %80 = vector.shape_cast %79 : vector<1x80x256xbf16> to vector<80x256xbf16>
    %cst_80 = arith.constant dense<0.000000e+00> : vector<2x256xf32>
    %81 = tpu.matmul %78, %80, %cst_80 {dimension_numbers = #tpu.dot_dimension_numbers<[1], [0], [0], [1], [0, 0, 1, 1], [], []>} : vector<2x80xbf16>, vector<80x256xbf16>, vector<2x256xf32> -> vector<2x256xf32>
    %82 = arith.addf %74, %81 : vector<2x256xf32>
    %c30 = arith.constant 30 : index
    %c0_81 = arith.constant 0 : index
    %83 = vector.load %arg6[%c30, %c0_81] : memref<34x54xbf16, #tpu.memory_space<vmem>>, vector<2x21xbf16>
    %84 = arith.extf %83 : vector<2x21xbf16> to vector<2x21xf32>
    %cst_82 = arith.constant dense<0.000000e+00> : vector<2x80xf32>
    %85 = tpu.matmul %84, %59, %cst_82 {dimension_numbers = #tpu.dot_dimension_numbers<[1], [0], [0], [1], [0, 0, 1, 1], [], []>} : vector<2x21xf32>, vector<21x80xf32>, vector<2x80xf32> -> vector<2x80xf32>
    %86 = arith.truncf %85 : vector<2x80xf32> to vector<2x80xbf16>
    %c3 = arith.constant 3 : index
    %c0_83 = arith.constant 0 : index
    %c0_84 = arith.constant 0 : index
    %87 = vector.load %arg7[%c3, %c0_83, %c0_84] : memref<5x80x256xbf16, #tpu.memory_space<vmem>>, vector<1x80x256xbf16>
    %88 = vector.shape_cast %87 : vector<1x80x256xbf16> to vector<80x256xbf16>
    %cst_85 = arith.constant dense<0.000000e+00> : vector<2x256xf32>
    %89 = tpu.matmul %86, %88, %cst_85 {dimension_numbers = #tpu.dot_dimension_numbers<[1], [0], [0], [1], [0, 0, 1, 1], [], []>} : vector<2x80xbf16>, vector<80x256xbf16>, vector<2x256xf32> -> vector<2x256xf32>
    %90 = arith.addf %82, %89 : vector<2x256xf32>
    %c32 = arith.constant 32 : index
    %c0_86 = arith.constant 0 : index
    %91 = vector.load %arg6[%c32, %c0_86] : memref<34x54xbf16, #tpu.memory_space<vmem>>, vector<2x21xbf16>
    %92 = arith.extf %91 : vector<2x21xbf16> to vector<2x21xf32>
    %cst_87 = arith.constant dense<0.000000e+00> : vector<2x80xf32>
    %93 = tpu.matmul %92, %59, %cst_87 {dimension_numbers = #tpu.dot_dimension_numbers<[1], [0], [0], [1], [0, 0, 1, 1], [], []>} : vector<2x21xf32>, vector<21x80xf32>, vector<2x80xf32> -> vector<2x80xf32>
    %94 = arith.truncf %93 : vector<2x80xf32> to vector<2x80xbf16>
    %c4 = arith.constant 4 : index
    %c0_88 = arith.constant 0 : index
    %c0_89 = arith.constant 0 : index
    %95 = vector.load %arg7[%c4, %c0_88, %c0_89] : memref<5x80x256xbf16, #tpu.memory_space<vmem>>, vector<1x80x256xbf16>
    %96 = vector.shape_cast %95 : vector<1x80x256xbf16> to vector<80x256xbf16>
    %cst_90 = arith.constant dense<0.000000e+00> : vector<2x256xf32>
    %97 = tpu.matmul %94, %96, %cst_90 {dimension_numbers = #tpu.dot_dimension_numbers<[1], [0], [0], [1], [0, 0, 1, 1], [], []>} : vector<2x80xbf16>, vector<80x256xbf16>, vector<2x256xf32> -> vector<2x256xf32>
    %98 = arith.addf %90, %97 : vector<2x256xf32>
    %c0_91 = arith.constant 0 : index
    %c512 = arith.constant 512 : index
    %99 = vector.load %arg10[%c0_91, %c512] : memref<1x1024xf32, #tpu.memory_space<vmem>>, vector<1x256xf32>
    %100 = vector.broadcast %99 : vector<1x256xf32> to vector<2x256xf32>
    %101 = arith.addf %98, %100 : vector<2x256xf32>
    %cst_92 = arith.constant 0.000000e+00 : f32
    %102 = vector.broadcast %cst_92 : f32 to vector<2x256xf32>
    %103 = arith.maximumf %101, %102 : vector<2x256xf32>
    %104 = arith.truncf %103 : vector<2x256xf32> to vector<2x256xbf16>
    %c0_93 = arith.constant 0 : index
    %c0_94 = arith.constant 0 : index
    %105 = vector.load %arg8[%c0_93, %c0_94] : memref<256x128xbf16, #tpu.memory_space<vmem>>, vector<256x128xbf16>
    %cst_95 = arith.constant dense<0.000000e+00> : vector<2x128xf32>
    %106 = tpu.matmul %104, %105, %cst_95 {dimension_numbers = #tpu.dot_dimension_numbers<[1], [0], [0], [1], [0, 0, 1, 1], [], []>} : vector<2x256xbf16>, vector<256x128xbf16>, vector<2x128xf32> -> vector<2x128xf32>
    %c0_96 = arith.constant 0 : index
    %c768 = arith.constant 768 : index
    %107 = vector.load %arg10[%c0_96, %c768] : memref<1x1024xf32, #tpu.memory_space<vmem>>, vector<1x128xf32>
    %108 = vector.broadcast %107 : vector<1x128xf32> to vector<2x128xf32>
    %109 = arith.addf %106, %108 : vector<2x128xf32>
    %cst_97 = arith.constant 0.000000e+00 : f32
    %110 = vector.broadcast %cst_97 : f32 to vector<2x128xf32>
    %111 = arith.maximumf %109, %110 : vector<2x128xf32>
    %112 = arith.truncf %111 : vector<2x128xf32> to vector<2x128xbf16>
    %c0_98 = arith.constant 0 : index
    %c0_99 = arith.constant 0 : index
    %113 = vector.load %arg9[%c0_98, %c0_99] : memref<128x128xbf16, #tpu.memory_space<vmem>>, vector<128x128xbf16>
    %cst_100 = arith.constant dense<0.000000e+00> : vector<2x128xf32>
    %114 = tpu.matmul %112, %113, %cst_100 {dimension_numbers = #tpu.dot_dimension_numbers<[1], [0], [0], [1], [0, 0, 1, 1], [], []>} : vector<2x128xbf16>, vector<128x128xbf16>, vector<2x128xf32> -> vector<2x128xf32>
    %c0_101 = arith.constant 0 : index
    %c896 = arith.constant 896 : index
    %115 = vector.load %arg10[%c0_101, %c896] : memref<1x1024xf32, #tpu.memory_space<vmem>>, vector<1x128xf32>
    %116 = vector.broadcast %115 : vector<1x128xf32> to vector<2x128xf32>
    %117 = arith.addf %114, %116 : vector<2x128xf32>
    %c0_102 = arith.constant 0 : index
    %c0_103 = arith.constant 0 : index
    %118 = vector.load %arg11[%c0_102, %c0_103] : memref<2x128xf32, #tpu.memory_space<vmem>>, vector<2x128xf32>
    tpu.vector_store %arg11[%c0_102, %c0_103], %117 {strides = array<i32>} : memref<2x128xf32, #tpu.memory_space<vmem>>, vector<2x128xf32>,
    return
  }
  func.func @transform_0(%arg0: i32) -> (i32, i32) {
    %c0_i32 = arith.constant 0 : i32
    %c0_i32_0 = arith.constant 0 : i32
    return %arg0, %c0_i32 : i32, i32
  }
  func.func @transform_1(%arg0: i32) -> (i32, i32) {
    %c0_i32 = arith.constant 0 : i32
    %c0_i32_0 = arith.constant 0 : i32
    %c0_i32_1 = arith.constant 0 : i32
    return %c0_i32, %c0_i32_0 : i32, i32
  }
  func.func @transform_2(%arg0: i32) -> (i32, i32) {
    %c0_i32 = arith.constant 0 : i32
    %c0_i32_0 = arith.constant 0 : i32
    %c0_i32_1 = arith.constant 0 : i32
    return %c0_i32, %c0_i32_0 : i32, i32
  }
  func.func @transform_3(%arg0: i32) -> (i32, i32, i32) {
    %c0_i32 = arith.constant 0 : i32
    %c0_i32_0 = arith.constant 0 : i32
    %c0_i32_1 = arith.constant 0 : i32
    %c0_i32_2 = arith.constant 0 : i32
    return %c0_i32, %c0_i32_0, %c0_i32_1 : i32, i32, i32
  }
  func.func @transform_4(%arg0: i32) -> (i32, i32) {
    %c0_i32 = arith.constant 0 : i32
    %c0_i32_0 = arith.constant 0 : i32
    %c0_i32_1 = arith.constant 0 : i32
    return %c0_i32, %c0_i32_0 : i32, i32
  }
  func.func @transform_5(%arg0: i32) -> (i32, i32) {
    %c0_i32 = arith.constant 0 : i32
    %c0_i32_0 = arith.constant 0 : i32
    %c0_i32_1 = arith.constant 0 : i32
    return %c0_i32, %c0_i32_0 : i32, i32
  }
  func.func @transform_6(%arg0: i32) -> (i32, i32, i32) {
    %c0_i32 = arith.constant 0 : i32
    %c0_i32_0 = arith.constant 0 : i32
    %c0_i32_1 = arith.constant 0 : i32
    %c0_i32_2 = arith.constant 0 : i32
    return %c0_i32, %c0_i32_0, %c0_i32_1 : i32, i32, i32
  }
  func.func @transform_7(%arg0: i32) -> (i32, i32) {
    %c0_i32 = arith.constant 0 : i32
    %c0_i32_0 = arith.constant 0 : i32
    %c0_i32_1 = arith.constant 0 : i32
    return %c0_i32, %c0_i32_0 : i32, i32
  }
  func.func @transform_8(%arg0: i32) -> (i32, i32) {
    %c0_i32 = arith.constant 0 : i32
    %c0_i32_0 = arith.constant 0 : i32
    %c0_i32_1 = arith.constant 0 : i32
    return %c0_i32, %c0_i32_0 : i32, i32
  }
  func.func @transform_9(%arg0: i32) -> (i32, i32) {
    %c0_i32 = arith.constant 0 : i32
    %c0_i32_0 = arith.constant 0 : i32
    %c0_i32_1 = arith.constant 0 : i32
    return %c0_i32, %c0_i32_0 : i32, i32
  }
  func.func @transform_10(%arg0: i32) -> (i32, i32) {
    %c0_i32 = arith.constant 0 : i32
    %c0_i32_0 = arith.constant 0 : i32
    return %arg0, %c0_i32 : i32, i32
  }
}

</mosaic_0001>

<llo_original>
// kernel: simple_conv_forward.1
$region0: #{simple_conv_forward.1}
  #allocation0 [shape = 'u32[]', space=smem, size = 0x4, offset = 0x4, fixed_abs, tag = 'smem constant byte address 0x4 - core index']
  #allocation1 [shape = 'u32[72,128]{1,0:T(1,128)}', space=vmem, size = 0x9000, scoped, tag = 'internal scratch']
  #allocation2 [shape = 'f32[56,200]{1,0:T(8,128)}', space=vmem, size = 0xe000, scoped, tag = 'scratch operand']
  #allocation3 [shape = 'f32[56,96]{1,0:T(8,128)}', space=vmem, size = 0x7000, scoped, tag = 'scratch operand']
  #allocation4 [shape = 'f32[24,96]{1,0:T(8,128)}', space=vmem, size = 0x3000, scoped, tag = 'scratch operand']
  #allocation5 [shape = 'f32[22,160]{1,0:T(8,128)}', space=vmem, size = 0x6000, scoped, tag = 'scratch operand']
  #allocation6 [shape = 'f32[22,80]{1,0:T(8,128)}', space=vmem, size = 0x3000, scoped, tag = 'scratch operand']
  %s0 = inlined_call_operand.vmem [shape: bf16[56,112], index: 0, kind: input, shape index: {}]
  %s1 = inlined_call_operand.vmem [shape: bf16[112,200], index: 1, kind: input, shape index: {}]
  %s2 = inlined_call_operand.vmem [shape: bf16[198,96], index: 2, kind: input, shape index: {}]
  %s3 = inlined_call_operand.vmem [shape: bf16[3,96,160], index: 3, kind: input, shape index: {}]
  %s4 = inlined_call_operand.vmem [shape: bf16[159,80], index: 4, kind: input, shape index: {}]
  %s5 = inlined_call_operand.vmem [shape: bf16[34,54], index: 5, kind: input, shape index: {}]
  %s6 = inlined_call_operand.vmem [shape: bf16[5,80,256], index: 6, kind: input, shape index: {}]
  %s7 = inlined_call_operand.vmem [shape: bf16[256,128], index: 7, kind: input, shape index: {}]
  %s8 = inlined_call_operand.vmem [shape: bf16[128,128], index: 8, kind: input, shape index: {}]
  %s9 = inlined_call_operand.vmem [shape: f32[1,1024], index: 9, kind: input, shape index: {}]
  %s10 = inlined_call_operand.hbm [shape: f32[2,128], index: 10, kind: output, shape index: {}]
  %s11 = sld [smem:[#allocation0]]
  $region50: #{simple_conv_forward.1} parent=0
    _
  %s13 = ssub.s32 1, %s11
  %s14 = scalar_select 0, %s13, %s11
  $region1: #{simple_conv_forward.1} parent=0
    #allocation7 [shape = 'u8[1024]{0}', space=vmem, size = 0x400, scoped, tag = 'output window, operand 0, single buffered']
    #allocation8 [shape = 's32[1]{0}', space=sflag, size = 0x4, scoped, tag = 'scoped memory for simple_conv_forward.1']
    %15 = vsyncpa [#allocation8], 0
    // Predicated region
    $region2: #{simple_conv_forward.1} parent=1 // pred_check
      _
    $region3: #{simple_conv_forward.1} parent=1 // pred_check_branch
      %17 = sbr.rel (0) target = $region5
    $region4: #{simple_conv_forward.1} parent=1 // pred_region
      _
    $region5: #{simple_conv_forward.1} parent=1 // pred_fallthru
      _
    // Predicated region
    $region6: #{simple_conv_forward.1} parent=1 // pred_check
      _
    $region7: #{simple_conv_forward.1} parent=1 // pred_check_branch
      %19 = sbr.rel (0) target = $region9
    $region8: #{simple_conv_forward.1} parent=1 // pred_region
      _
    $region9: #{simple_conv_forward.1} parent=1 // pred_fallthru
      _
    // Predicated region
    $region10: #{simple_conv_forward.1} parent=1 // pred_check
      _
    $region11: #{simple_conv_forward.1} parent=1 // pred_check_branch
      %21 = sbr.rel (0) target = $region13
    $region12: #{simple_conv_forward.1} parent=1 // pred_region
      _
    $region13: #{simple_conv_forward.1} parent=1 // pred_fallthru
      _
    // Predicated region
    $region14: #{simple_conv_forward.1} parent=1 // pred_check
      _
    $region15: #{simple_conv_forward.1} parent=1 // pred_check_branch
      %23 = sbr.rel (0) target = $region17
    $region16: #{simple_conv_forward.1} parent=1 // pred_region
      _
    $region17: #{simple_conv_forward.1} parent=1 // pred_fallthru
      _
    // Predicated region
    $region18: #{simple_conv_forward.1} parent=1 // pred_check
      _
    $region19: #{simple_conv_forward.1} parent=1 // pred_check_branch
      %25 = sbr.rel (0) target = $region21
    $region20: #{simple_conv_forward.1} parent=1 // pred_region
      _
    $region21: #{simple_conv_forward.1} parent=1 // pred_fallthru
      _
    // Predicated region
    $region22: #{simple_conv_forward.1} parent=1 // pred_check
      _
    $region23: #{simple_conv_forward.1} parent=1 // pred_check_branch
      %27 = sbr.rel (0) target = $region25
    $region24: #{simple_conv_forward.1} parent=1 // pred_region
      _
    $region25: #{simple_conv_forward.1} parent=1 // pred_fallthru
      _
    // Predicated region
    $region26: #{simple_conv_forward.1} parent=1 // pred_check
      _
    $region27: #{simple_conv_forward.1} parent=1 // pred_check_branch
      %29 = sbr.rel (0) target = $region29
    $region28: #{simple_conv_forward.1} parent=1 // pred_region
      _
    $region29: #{simple_conv_forward.1} parent=1 // pred_fallthru
      _
    // Predicated region
    $region30: #{simple_conv_forward.1} parent=1 // pred_check
      _
    $region31: #{simple_conv_forward.1} parent=1 // pred_check_branch
      %31 = sbr.rel (0) target = $region33
    $region32: #{simple_conv_forward.1} parent=1 // pred_region
      _
    $region33: #{simple_conv_forward.1} parent=1 // pred_fallthru
      _
    // Predicated region
    $region34: #{simple_conv_forward.1} parent=1 // pred_check
      _
    $region35: #{simple_conv_forward.1} parent=1 // pred_check_branch
      %33 = sbr.rel (0) target = $region37
    $region36: #{simple_conv_forward.1} parent=1 // pred_region
      _
    $region37: #{simple_conv_forward.1} parent=1 // pred_fallthru
      _
    // Predicated region
    $region38: #{simple_conv_forward.1} parent=1 // pred_check
      _
    $region39: #{simple_conv_forward.1} parent=1 // pred_check_branch
      %35 = sbr.rel (0) target = $region41
    $region40: #{simple_conv_forward.1} parent=1 // pred_region
      _
    $region41: #{simple_conv_forward.1} parent=1 // pred_fallthru
      _
    %v37 = vld [vmem:[%s0] sm:$0xf]
    %v38 = vld [vmem:[%s0 + $0x4] sm:$0xf]
    %v39 = vld [vmem:[%s0 + $0x8] sm:$0xf]
    %v40 = vld [vmem:[%s0 + $0xc] sm:$0xf]
    %v41 = vld [vmem:[%s0 + $0x10] sm:$0xf]
    %v42 = vld [vmem:[%s0 + $0x14] sm:$0xf]
    %v43 = vld [vmem:[%s0 + $0x18] sm:$0xf]
    %v44 = vld [vmem:[%s1] sm:$0xff]
    %v45 = vld [vmem:[%s1 + $0x8] sm:$0xff]
    %v46 = vld [vmem:[%s1 + $0x10] sm:$0xff]
    %v47 = vld [vmem:[%s1 + $0x18] sm:$0xff]
    %v48 = vld [vmem:[%s1 + $0x20] sm:$0xff]
    %v49 = vld [vmem:[%s1 + $0x28] sm:$0xff]
    %v50 = vld [vmem:[%s1 + $0x30] sm:$0xff]
    %v51 = vld [vmem:[%s1 + $0x38] sm:$0xff]
    %v52 = vld [vmem:[%s1 + $0x40] sm:$0xff]
    %v53 = vld [vmem:[%s1 + $0x48] sm:$0xff]
    %v54 = vld [vmem:[%s1 + $0x50] sm:$0xff]
    %v55 = vld [vmem:[%s1 + $0x58] sm:$0xff]
    %v56 = vld [vmem:[%s1 + $0x60] sm:$0xff]
    %v57 = vld [vmem:[%s1 + $0x68] sm:$0xff]
    %v58 = vld [vmem:[%s9] sm:$0x3]
    %v60 = vperm.slane %v58, 0
    %v61 = vperm.slane %v58, 1
    %v71 = vunpack.c.l.b16 %v37
    %v72 = vunpack.c.l.b16 %v38
    %v73 = vunpack.c.l.b16 %v39
    %v74 = vunpack.c.l.b16 %v40
    %v75 = vunpack.c.l.b16 %v41
    %v76 = vunpack.c.l.b16 %v42
    %v77 = vunpack.c.l.b16 %v43
    %v78 = vpack.c.b16 %v72, %v71
    %v79 = vpack.c.b16 %v74, %v73
    %v80 = vpack.c.b16 %v76, %v75
    %v81 = vpack.c.b16 %v77, %v77
    %v96 = vunpack.c.l.b16 %v44
    %v97 = vunpack.c.h.b16 %v44
    %v98 = vunpack.c.l.b16 %v45
    %v99 = vunpack.c.h.b16 %v45
    %v100 = vunpack.c.l.b16 %v46
    %v101 = vunpack.c.h.b16 %v46
    %v102 = vunpack.c.l.b16 %v47
    %v103 = vunpack.c.h.b16 %v47
    %v104 = vunpack.c.l.b16 %v48
    %v105 = vunpack.c.h.b16 %v48
    %v106 = vunpack.c.l.b16 %v49
    %v107 = vunpack.c.h.b16 %v49
    %v108 = vunpack.c.l.b16 %v50
    %v109 = vunpack.c.h.b16 %v50
    %v110 = vunpack.c.l.b16 %v51
    %v111 = vunpack.c.h.b16 %v51
    %v112 = vunpack.c.l.b16 %v52
    %v113 = vunpack.c.h.b16 %v52
    %v114 = vunpack.c.l.b16 %v53
    %v115 = vunpack.c.h.b16 %v53
    %v116 = vunpack.c.l.b16 %v54
    %v117 = vunpack.c.h.b16 %v54
    %v118 = vunpack.c.l.b16 %v55
    %v119 = vunpack.c.h.b16 %v55
    %v120 = vunpack.c.l.b16 %v56
    %v121 = vunpack.c.h.b16 %v56
    %v122 = vunpack.c.l.b16 %v57
    %v123 = vunpack.c.h.b16 %v57
    %v124 = vpack.c.b16 %v98, %v96
    %v125 = vpack.c.b16 %v99, %v97
    %v126 = vpack.c.b16 %v102, %v100
    %v127 = vpack.c.b16 %v103, %v101
    %v128 = vpack.c.b16 %v106, %v104
    %v129 = vpack.c.b16 %v107, %v105
    %v130 = vpack.c.b16 %v110, %v108
    %v131 = vpack.c.b16 %v111, %v109
    %v132 = vpack.c.b16 %v114, %v112
    %v133 = vpack.c.b16 %v115, %v113
    %v134 = vpack.c.b16 %v118, %v116
    %v135 = vpack.c.b16 %v119, %v117
    %v136 = vpack.c.b16 %v122, %v120
    %v137 = vpack.c.b16 %v123, %v121
    %vm152 = vcmask 916480
    %v154 = vsel %vm152, %v78, 0
    %v157 = vsel %vm152, %v79, 0
    %v160 = vsel %vm152, %v80, 0
    %v163 = vsel %vm152, %v81, 0
    %165 = vmatpush.bf16.msra.mxu0 0
    %166 = vmatpush.bf16.msra.mxu0 %v136
    %167 = vmatpush.bf16.msra.mxu0 %v134
    %168 = vmatpush.bf16.msra.mxu0 %v132
    %169 = vmatpush.bf16.msra.mxu0 %v130
    %170 = vmatpush.bf16.msra.mxu0 %v128
    %171 = vmatpush.bf16.msra.mxu0 %v126
    %172 = vmatpush.bf16.msra.mxu0 %v124
    %173 = vmatmul.bf16.gmra.mxu0 %v154
    %v174 = vpop.f32.mrf.mxu0
    %v175 = vadd.f32 %v60, %v174
    %v176 = vpop.f32.mrf.mxu0
    %v177 = vadd.f32 %v60, %v176
    %178 = vmatmul.bf16.gmra.mxu0 %v157
    %v179 = vpop.f32.mrf.mxu0
    %v180 = vadd.f32 %v60, %v179
    %v181 = vpop.f32.mrf.mxu0
    %v182 = vadd.f32 %v60, %v181
    %183 = vmatmul.bf16.gmra.mxu0 %v160
    %v184 = vpop.f32.mrf.mxu0
    %v185 = vadd.f32 %v60, %v184
    %v186 = vpop.f32.mrf.mxu0
    %v187 = vadd.f32 %v60, %v186
    %188 = vmatmul.bf16.gmra.mxu0 %v163
    %v189 = vpop.f32.mrf.mxu0
    %v190 = vadd.f32 %v60, %v189
    %v191 = vpop.f32.mrf.mxu0
    %192 = vdwg.mxu0
    %193 = vmatpush.bf16.msra.mxu0 0
    %194 = vmatpush.bf16.msra.mxu0 %v137
    %195 = vmatpush.bf16.msra.mxu0 %v135
    %196 = vmatpush.bf16.msra.mxu0 %v133
    %197 = vmatpush.bf16.msra.mxu0 %v131
    %198 = vmatpush.bf16.msra.mxu0 %v129
    %199 = vmatpush.bf16.msra.mxu0 %v127
    %200 = vmatpush.bf16.msra.mxu0 %v125
    %201 = vmatmul.bf16.gmra.mxu0 %v154
    %v202 = vpop.f32.mrf.mxu0
    %v203 = vadd.f32 %v61, %v202
    %v204 = vpop.f32.mrf.mxu0
    %v205 = vadd.f32 %v61, %v204
    %206 = vmatmul.bf16.gmra.mxu0 %v157
    %v207 = vpop.f32.mrf.mxu0
    %v208 = vadd.f32 %v61, %v207
    %v209 = vpop.f32.mrf.mxu0
    %v210 = vadd.f32 %v61, %v209
    %211 = vmatmul.bf16.gmra.mxu0 %v160
    %v212 = vpop.f32.mrf.mxu0
    %v213 = vadd.f32 %v61, %v212
    %v214 = vpop.f32.mrf.mxu0
    %v215 = vadd.f32 %v61, %v214
    %216 = vmatmul.bf16.gmra.mxu0 %v163
    %v217 = vpop.f32.mrf.mxu0
    %v218 = vadd.f32 %v61, %v217
    %v219 = vpop.f32.mrf.mxu0
    %220 = vdwg.mxu0
    %v221 = vmax.f32 %v175, 0.0
    %v222 = vmax.f32 %v203, 0.0
    %v223 = vmax.f32 %v177, 0.0
    %v224 = vmax.f32 %v205, 0.0
    %v225 = vmax.f32 %v180, 0.0
    %v226 = vmax.f32 %v208, 0.0
    %v227 = vmax.f32 %v182, 0.0
    %v228 = vmax.f32 %v210, 0.0
    %v229 = vmax.f32 %v185, 0.0
    %v230 = vmax.f32 %v213, 0.0
    %v231 = vmax.f32 %v187, 0.0
    %v232 = vmax.f32 %v215, 0.0
    %v233 = vmax.f32 %v190, 0.0
    %v234 = vmax.f32 %v218, 0.0
    %235 = vst [vmem:[#allocation2] sm:$0xff] %v221
    %vm236 = vcmask 588800
    %237 = vst.msk [vmem:[#allocation2 + $0x8] sm:$0xff] %vm236, %v222
    %238 = vst [vmem:[#allocation2 + $0x10] sm:$0xff] %v223
    %239 = vst.msk [vmem:[#allocation2 + $0x18] sm:$0xff] %vm236, %v224
    %240 = vst [vmem:[#allocation2 + $0x20] sm:$0xff] %v225
    %241 = vst.msk [vmem:[#allocation2 + $0x28] sm:$0xff] %vm236, %v226
    %242 = vst [vmem:[#allocation2 + $0x30] sm:$0xff] %v227
    %243 = vst.msk [vmem:[#allocation2 + $0x38] sm:$0xff] %vm236, %v228
    %244 = vst [vmem:[#allocation2 + $0x40] sm:$0xff] %v229
    %245 = vst.msk [vmem:[#allocation2 + $0x48] sm:$0xff] %vm236, %v230
    %246 = vst [vmem:[#allocation2 + $0x50] sm:$0xff] %v231
    %247 = vst.msk [vmem:[#allocation2 + $0x58] sm:$0xff] %vm236, %v232
    %248 = vst [vmem:[#allocation2 + $0x60] sm:$0xff] %v233
    %249 = vst.msk [vmem:[#allocation2 + $0x68] sm:$0xff] %vm236, %v234
    %v250 = vld [vmem:[#allocation2] sm:$0xff]
    %v251 = vld [vmem:[#allocation2 + $0x8] sm:$0xff]
    %v252 = vld [vmem:[#allocation2 + $0x10] sm:$0xff]
    %v253 = vld [vmem:[#allocation2 + $0x18] sm:$0xff]
    %v254 = vld [vmem:[#allocation2 + $0x20] sm:$0xff]
    %v255 = vld [vmem:[#allocation2 + $0x28] sm:$0xff]
    %v256 = vld [vmem:[#allocation2 + $0x30] sm:$0xff]
    %v257 = vld [vmem:[#allocation2 + $0x38] sm:$0xff]
    %v258 = vld [vmem:[#allocation2 + $0x40] sm:$0xff]
    %v259 = vld [vmem:[#allocation2 + $0x48] sm:$0xff]
    %v260 = vld [vmem:[#allocation2 + $0x50] sm:$0xff]
    %v261 = vld [vmem:[#allocation2 + $0x58] sm:$0xff]
    %v262 = vld [vmem:[#allocation2 + $0x60] sm:$0xff]
    %v263 = vld [vmem:[#allocation2 + $0x68] sm:$0xff]
    %278 = vrot.lane.b32.xlu0 %v250, 127
    %v279 = vpop.permute.xlu0 %278
    %280 = vrot.lane.b32.xlu0 %v251, 127
    %v281 = vpop.permute.xlu0 %280
    %282 = vrot.lane.b32.xlu0 %v252, 127
    %v283 = vpop.permute.xlu0 %282
    %284 = vrot.lane.b32.xlu0 %v253, 127
    %v285 = vpop.permute.xlu0 %284
    %286 = vrot.lane.b32.xlu0 %v254, 127
    %v287 = vpop.permute.xlu0 %286
    %288 = vrot.lane.b32.xlu0 %v255, 127
    %v289 = vpop.permute.xlu0 %288
    %290 = vrot.lane.b32.xlu0 %v256, 127
    %v291 = vpop.permute.xlu0 %290
    %292 = vrot.lane.b32.xlu0 %v257, 127
    %v293 = vpop.permute.xlu0 %292
    %294 = vrot.lane.b32.xlu0 %v258, 127
    %v295 = vpop.permute.xlu0 %294
    %296 = vrot.lane.b32.xlu0 %v259, 127
    %v297 = vpop.permute.xlu0 %296
    %298 = vrot.lane.b32.xlu0 %v260, 127
    %v299 = vpop.permute.xlu0 %298
    %300 = vrot.lane.b32.xlu0 %v261, 127
    %v301 = vpop.permute.xlu0 %300
    %302 = vrot.lane.b32.xlu0 %v262, 127
    %v303 = vpop.permute.xlu0 %302
    %304 = vrot.lane.b32.xlu0 %v263, 127
    %v305 = vpop.permute.xlu0 %304
    %vm306 = vcmask 1039360
    %v307 = vsel %vm306, %v279, %v281
    %v308 = vsel %vm306, %v283, %v285
    %v309 = vsel %vm306, %v287, %v289
    %v310 = vsel %vm306, %v291, %v293
    %v311 = vsel %vm306, %v295, %v297
    %v312 = vsel %vm306, %v299, %v301
    %v313 = vsel %vm306, %v303, %v305
    %v328 = vmax.f32 %v250, %v307
    %v329 = vmax.f32 %v251, %v281
    %v330 = vmax.f32 %v252, %v308
    %v331 = vmax.f32 %v253, %v285
    %v332 = vmax.f32 %v254, %v309
    %v333 = vmax.f32 %v255, %v289
    %v334 = vmax.f32 %v256, %v310
    %v335 = vmax.f32 %v257, %v293
    %v336 = vmax.f32 %v258, %v311
    %v337 = vmax.f32 %v259, %v297
    %v338 = vmax.f32 %v260, %v312
    %v339 = vmax.f32 %v261, %v301
    %v340 = vmax.f32 %v262, %v313
    %v341 = vmax.f32 %v263, %v305
    %342 = vrot.lane.b32.xlu0 %v250, 126
    %v343 = vpop.permute.xlu0 %342
    %344 = vrot.lane.b32.xlu0 %v251, 126
    %v345 = vpop.permute.xlu0 %344
    %346 = vrot.lane.b32.xlu0 %v252, 126
    %v347 = vpop.permute.xlu0 %346
    %348 = vrot.lane.b32.xlu0 %v253, 126
    %v349 = vpop.permute.xlu0 %348
    %350 = vrot.lane.b32.xlu0 %v254, 126
    %v351 = vpop.permute.xlu0 %350
    %352 = vrot.lane.b32.xlu0 %v255, 126
    %v353 = vpop.permute.xlu0 %352
    %354 = vrot.lane.b32.xlu0 %v256, 126
    %v355 = vpop.permute.xlu0 %354
    %356 = vrot.lane.b32.xlu0 %v257, 126
    %v357 = vpop.permute.xlu0 %356
    %358 = vrot.lane.b32.xlu0 %v258, 126
    %v359 = vpop.permute.xlu0 %358
    %360 = vrot.lane.b32.xlu0 %v259, 126
    %v361 = vpop.permute.xlu0 %360
    %362 = vrot.lane.b32.xlu0 %v260, 126
    %v363 = vpop.permute.xlu0 %362
    %364 = vrot.lane.b32.xlu0 %v261, 126
    %v365 = vpop.permute.xlu0 %364
    %366 = vrot.lane.b32.xlu0 %v262, 126
    %v367 = vpop.permute.xlu0 %366
    %368 = vrot.lane.b32.xlu0 %v263, 126
    %v369 = vpop.permute.xlu0 %368
    %vm370 = vcmask 1031168
    %v371 = vsel %vm370, %v343, %v345
    %v372 = vsel %vm370, %v347, %v349
    %v373 = vsel %vm370, %v351, %v353
    %v374 = vsel %vm370, %v355, %v357
    %v375 = vsel %vm370, %v359, %v361
    %v376 = vsel %vm370, %v363, %v365
    %v377 = vsel %vm370, %v367, %v369
    %v392 = vmax.f32 %v328, %v371
    %v393 = vmax.f32 %v329, %v345
    %v394 = vmax.f32 %v330, %v372
    %v395 = vmax.f32 %v331, %v349
    %v396 = vmax.f32 %v332, %v373
    %v397 = vmax.f32 %v333, %v353
    %v398 = vmax.f32 %v334, %v374
    %v399 = vmax.f32 %v335, %v357
    %v400 = vmax.f32 %v336, %v375
    %v401 = vmax.f32 %v337, %v361
    %v402 = vmax.f32 %v338, %v376
    %v403 = vmax.f32 %v339, %v365
    %v404 = vmax.f32 %v340, %v377
    %v405 = vmax.f32 %v341, %v369
    %v406 = vld [vmem:[%s2] sm:$0xf]
    %v407 = vld [vmem:[%s2 + $0x4] sm:$0xf]
    %v408 = vld [vmem:[%s2 + $0x8] sm:$0xf]
    %v409 = vld [vmem:[%s2 + $0xc] sm:$0xf]
    %v410 = vld [vmem:[%s2 + $0x10] sm:$0xf]
    %v411 = vld [vmem:[%s2 + $0x14] sm:$0xf]
    %v412 = vld [vmem:[%s2 + $0x18] sm:$0xf]
    %v413 = vld [vmem:[%s2 + $0x1c] sm:$0xf]
    %v414 = vld [vmem:[%s2 + $0x20] sm:$0xf]
    %v415 = vld [vmem:[%s2 + $0x24] sm:$0xf]
    %v416 = vld [vmem:[%s2 + $0x28] sm:$0xf]
    %v417 = vld [vmem:[%s2 + $0x2c] sm:$0xf]
    %v418 = vld [vmem:[%s2 + $0x30] sm:$0xf]
    %v419 = vld [vmem:[%s2 + $0x34] sm:$0xf]
    %v420 = vld [vmem:[%s2 + $0x38] sm:$0xf]
    %v421 = vld [vmem:[%s2 + $0x3c] sm:$0xf]
    %v422 = vld [vmem:[%s2 + $0x40] sm:$0xf]
    %v423 = vld [vmem:[%s2 + $0x44] sm:$0xf]
    %v424 = vld [vmem:[%s2 + $0x48] sm:$0xf]
    %v425 = vld [vmem:[%s2 + $0x4c] sm:$0xf]
    %v426 = vld [vmem:[%s2 + $0x50] sm:$0xf]
    %v427 = vld [vmem:[%s2 + $0x54] sm:$0xf]
    %v428 = vld [vmem:[%s2 + $0x58] sm:$0xf]
    %v429 = vld [vmem:[%s2 + $0x5c] sm:$0xf]
    %v430 = vld [vmem:[%s2 + $0x60] sm:$0x7]
    %v431 = vunpack.c.l.bf16 %v406
    %v432 = vunpack.c.l.bf16 %v407
    %v433 = vunpack.c.l.bf16 %v408
    %v434 = vunpack.c.l.bf16 %v409
    %v435 = vunpack.c.l.bf16 %v410
    %v436 = vunpack.c.l.bf16 %v411
    %v437 = vunpack.c.l.bf16 %v412
    %v438 = vunpack.c.l.bf16 %v413
    %v439 = vunpack.c.l.bf16 %v414
    %v440 = vunpack.c.l.bf16 %v415
    %v441 = vunpack.c.l.bf16 %v416
    %v442 = vunpack.c.l.bf16 %v417
    %v443 = vunpack.c.l.bf16 %v418
    %v444 = vunpack.c.l.bf16 %v419
    %v445 = vunpack.c.l.bf16 %v420
    %v446 = vunpack.c.l.bf16 %v421
    %v447 = vunpack.c.l.bf16 %v422
    %v448 = vunpack.c.l.bf16 %v423
    %v449 = vunpack.c.l.bf16 %v424
    %v450 = vunpack.c.l.bf16 %v425
    %v451 = vunpack.c.l.bf16 %v426
    %v452 = vunpack.c.l.bf16 %v427
    %v453 = vunpack.c.l.bf16 %v428
    %v454 = vunpack.c.l.bf16 %v429
    %v455 = vunpack.c.l.bf16 %v430
    %vm456 = vcmask 572416
    %v458 = vsel %vm456, %v393, 0
    %v461 = vsel %vm456, %v395, 0
    %v464 = vsel %vm456, %v397, 0
    %v467 = vsel %vm456, %v399, 0
    %v470 = vsel %vm456, %v401, 0
    %v473 = vsel %vm456, %v403, 0
    %v476 = vsel %vm456, %v405, 0
    %vm478 = vcmask 1045504
    %v480 = vsel %vm478, %v455, 0
    %482 = vmatpush.msra.mxu0 %v446
    %483 = vmatpush.msra.mxu0 %v445
    %484 = vmatpush.msra.mxu0 %v444
    %485 = vmatpush.msra.mxu0 %v443
    %486 = vmatpush.msra.mxu0 %v442
    %487 = vmatpush.msra.mxu0 %v441
    %488 = vmatpush.msra.mxu0 %v440
    %489 = vmatpush.msra.mxu0 %v439
    %490 = vmatpush.msra.mxu0 %v438
    %491 = vmatpush.msra.mxu0 %v437
    %492 = vmatpush.msra.mxu0 %v436
    %493 = vmatpush.msra.mxu0 %v435
    %494 = vmatpush.msra.mxu0 %v434
    %495 = vmatpush.msra.mxu0 %v433
    %496 = vmatpush.msra.mxu0 %v432
    %497 = vmatpush.msra.mxu0 %v431
    %498 = vmatmul.f32.gmra.mxu0 %v392
    %v499 = vpop.f32.mrf.mxu0
    %v500 = vadd.f32 0.0, %v499
    %501 = vmatmul.f32.gmra.mxu0 %v394
    %v502 = vpop.f32.mrf.mxu0
    %v503 = vadd.f32 0.0, %v502
    %504 = vmatmul.f32.gmra.mxu0 %v396
    %v505 = vpop.f32.mrf.mxu0
    %v506 = vadd.f32 0.0, %v505
    %507 = vmatmul.f32.gmra.mxu0 %v398
    %v508 = vpop.f32.mrf.mxu0
    %v509 = vadd.f32 0.0, %v508
    %510 = vmatmul.f32.gmra.mxu0 %v400
    %v511 = vpop.f32.mrf.mxu0
    %v512 = vadd.f32 0.0, %v511
    %513 = vmatmul.f32.gmra.mxu0 %v402
    %v514 = vpop.f32.mrf.mxu0
    %v515 = vadd.f32 0.0, %v514
    %516 = vmatmul.f32.gmra.mxu0 %v404
    %v517 = vpop.f32.mrf.mxu0
    %v518 = vadd.f32 0.0, %v517
    %519 = vdwg.mxu0
    %520 = vmatpush.msra.mxu0 0.0
    %521 = vmatpush.msra.mxu0 0.0
    %522 = vmatpush.msra.mxu0 0.0
    %523 = vmatpush.msra.mxu0 0.0
    %524 = vmatpush.msra.mxu0 0.0
    %525 = vmatpush.msra.mxu0 0.0
    %526 = vmatpush.msra.mxu0 0.0
    %527 = vmatpush.msra.mxu0 %v480
    %528 = vmatpush.msra.mxu0 %v454
    %529 = vmatpush.msra.mxu0 %v453
    %530 = vmatpush.msra.mxu0 %v452
    %531 = vmatpush.msra.mxu0 %v451
    %532 = vmatpush.msra.mxu0 %v450
    %533 = vmatpush.msra.mxu0 %v449
    %534 = vmatpush.msra.mxu0 %v448
    %535 = vmatpush.msra.mxu0 %v447
    %536 = vmatmul.f32.gmra.mxu0 %v458
    %v537 = vpop.f32.mrf.mxu0
    %v538 = vadd.f32 %v500, %v537
    %539 = vmatmul.f32.gmra.mxu0 %v461
    %v540 = vpop.f32.mrf.mxu0
    %v541 = vadd.f32 %v503, %v540
    %542 = vmatmul.f32.gmra.mxu0 %v464
    %v543 = vpop.f32.mrf.mxu0
    %v544 = vadd.f32 %v506, %v543
    %545 = vmatmul.f32.gmra.mxu0 %v467
    %v546 = vpop.f32.mrf.mxu0
    %v547 = vadd.f32 %v509, %v546
    %548 = vmatmul.f32.gmra.mxu0 %v470
    %v549 = vpop.f32.mrf.mxu0
    %v550 = vadd.f32 %v512, %v549
    %551 = vmatmul.f32.gmra.mxu0 %v473
    %v552 = vpop.f32.mrf.mxu0
    %v553 = vadd.f32 %v515, %v552
    %554 = vmatmul.f32.gmra.mxu0 %v476
    %v555 = vpop.f32.mrf.mxu0
    %v556 = vadd.f32 %v518, %v555
    %557 = vdwg.mxu0
    %vm558 = vcmask 785408
    %559 = vst.msk [vmem:[#allocation3] sm:$0xff] %vm558, %v538
    %560 = vst.msk [vmem:[#allocation3 + $0x8] sm:$0xff] %vm558, %v541
    %561 = vst.msk [vmem:[#allocation3 + $0x10] sm:$0xff] %vm558, %v544
    %562 = vst.msk [vmem:[#allocation3 + $0x18] sm:$0xff] %vm558, %v547
    %563 = vst.msk [vmem:[#allocation3 + $0x20] sm:$0xff] %vm558, %v550
    %564 = vst.msk [vmem:[#allocation3 + $0x28] sm:$0xff] %vm558, %v553
    %565 = vst.msk [vmem:[#allocation3 + $0x30] sm:$0xff] %vm558, %v556
    %v566 = vld [vmem:[#allocation3] sm:$0xff]
    %v567 = vld [vmem:[#allocation3 + $0x8] sm:$0xff]
    %v568 = vld [vmem:[#allocation3 + $0x10] sm:$0xff]
    %v569 = vld [vmem:[#allocation3 + $0x18] sm:$0xff]
    %v570 = vld [vmem:[#allocation3 + $0x20] sm:$0xff]
    %v571 = vld [vmem:[#allocation3 + $0x28] sm:$0xff]
    %v572 = vld [vmem:[#allocation3 + $0x30] sm:$0x3f]
    %v573 = vld [vmem:[#allocation3 + $0x1] sm:$0xff]
    %v574 = vld [vmem:[#allocation3 + $0x9] sm:$0xff]
    %v575 = vld [vmem:[#allocation3 + $0x11] sm:$0xff]
    %v576 = vld [vmem:[#allocation3 + $0x19] sm:$0xff]
    %v577 = vld [vmem:[#allocation3 + $0x21] sm:$0xff]
    %v578 = vld [vmem:[#allocation3 + $0x29] sm:$0xff]
    %v579 = vld [vmem:[#allocation3 + $0x31] sm:$0x3f]
    %v580 = vmax.f32 %v566, %v573
    %v581 = vmax.f32 %v567, %v574
    %v582 = vmax.f32 %v568, %v575
    %v583 = vmax.f32 %v569, %v576
    %v584 = vmax.f32 %v570, %v577
    %v585 = vmax.f32 %v571, %v578
    %v586 = vmax.f32 %v572, %v579
    %v587 = vld [vmem:[#allocation3 + $0x2] sm:$0xff]
    %v588 = vld [vmem:[#allocation3 + $0xa] sm:$0xff]
    %v589 = vld [vmem:[#allocation3 + $0x12] sm:$0xff]
    %v590 = vld [vmem:[#allocation3 + $0x1a] sm:$0xff]
    %v591 = vld [vmem:[#allocation3 + $0x22] sm:$0xff]
    %v592 = vld [vmem:[#allocation3 + $0x2a] sm:$0xff]
    %v593 = vld [vmem:[#allocation3 + $0x32] sm:$0x3f]
    %v594 = vmax.f32 %v580, %v587
    %v595 = vmax.f32 %v581, %v588
    %v596 = vmax.f32 %v582, %v589
    %v597 = vmax.f32 %v583, %v590
    %v598 = vmax.f32 %v584, %v591
    %v599 = vmax.f32 %v585, %v592
    %v600 = vmax.f32 %v586, %v593
    %v601 = vld [vmem:[%s5] sm:$0xf]
    %v602 = vld [vmem:[%s5 + $0x4] sm:$0xf]
    %v603 = vld [vmem:[%s5 + $0x8] sm:$0xf]
    %v604 = vunpack.c.l.bf16 %v601
    %v605 = vunpack.c.l.bf16 %v602
    %v606 = vunpack.c.l.bf16 %v603
    %vm607 = vcmask 441344
    %v609 = vsel %vm607, %v604, 0
    %v612 = vsel %vm607, %v605, 0
    %v615 = vsel %vm607, %v606, 0
    %v618 = vsel %vm478, %v600, 0
    %620 = vmatpush.msra.mxu0 0.0
    %621 = vmatpush.msra.mxu0 0.0
    %622 = vmatpush.msra.mxu0 0.0
    %623 = vmatpush.msra.mxu0 0.0
    %624 = vmatpush.msra.mxu0 0.0
    %625 = vmatpush.msra.mxu0 0.0
    %626 = vmatpush.msra.mxu0 0.0
    %627 = vmatpush.msra.mxu0 0.0
    %628 = vmatpush.msra.mxu0 0.0
    %629 = vmatpush.msra.mxu0 %v618
    %630 = vmatpush.msra.mxu0 %v599
    %631 = vmatpush.msra.mxu0 %v598
    %632 = vmatpush.msra.mxu0 %v597
    %633 = vmatpush.msra.mxu0 %v596
    %634 = vmatpush.msra.mxu0 %v595
    %635 = vmatpush.msra.mxu0 %v594
    %636 = vmatmul.f32.gmra.mxu0 %v609
    %v637 = vpop.f32.mrf.mxu0
    %v638 = vadd.f32 0.0, %v637
    %639 = vmatmul.f32.gmra.mxu0 %v612
    %v640 = vpop.f32.mrf.mxu0
    %v641 = vadd.f32 0.0, %v640
    %642 = vmatmul.f32.gmra.mxu0 %v615
    %v643 = vpop.f32.mrf.mxu0
    %v644 = vadd.f32 0.0, %v643
    %645 = vdwg.mxu0
    %646 = vst.msk [vmem:[#allocation4] sm:$0xff] %vm558, %v638
    %647 = vst.msk [vmem:[#allocation4 + $0x8] sm:$0xff] %vm558, %v641
    %648 = vst.msk [vmem:[#allocation4 + $0x10] sm:$0xff] %vm558, %v644
    %v649 = vld [vmem:[#allocation4] sm:$0xff]
    %v650 = vld [vmem:[#allocation4 + $0x8] sm:$0xff]
    %v651 = vld [vmem:[#allocation4 + $0x10] sm:$0x3f]
    %v652 = vpack.c.bf16 %v650, %v649
    %v653 = vpack.c.bf16 %v651, %v651
    %v654 = vld [vmem:[#allocation4 + $0x1] sm:$0xff]
    %v655 = vld [vmem:[#allocation4 + $0x9] sm:$0xff]
    %v656 = vld [vmem:[#allocation4 + $0x11] sm:$0x3f]
    %v657 = vpack.c.bf16 %v655, %v654
    %v658 = vpack.c.bf16 %v656, %v656
    %v659 = vld [vmem:[#allocation4 + $0x2] sm:$0xff]
    %v660 = vld [vmem:[#allocation4 + $0xa] sm:$0xff]
    %v661 = vld [vmem:[#allocation4 + $0x12] sm:$0x3f]
    %v662 = vpack.c.bf16 %v660, %v659
    %v663 = vpack.c.bf16 %v661, %v661
    %v664 = vld [vmem:[%s3] sm:$0xff]
    %v665 = vld [vmem:[%s3 + $0x8] sm:$0xff]
    %v666 = vld [vmem:[%s3 + $0x10] sm:$0xff]
    %v667 = vld [vmem:[%s3 + $0x18] sm:$0xff]
    %v668 = vld [vmem:[%s3 + $0x20] sm:$0xff]
    %v669 = vld [vmem:[%s3 + $0x28] sm:$0xff]
    %v670 = vld [vmem:[%s3 + $0x30] sm:$0xff]
    %v671 = vld [vmem:[%s3 + $0x38] sm:$0xff]
    %v672 = vld [vmem:[%s3 + $0x40] sm:$0xff]
    %v673 = vld [vmem:[%s3 + $0x48] sm:$0xff]
    %v674 = vld [vmem:[%s3 + $0x50] sm:$0xff]
    %v675 = vld [vmem:[%s3 + $0x58] sm:$0xff]
    %s676 = scalar_lea.vmem %s3, 96
    %v677 = vld [vmem:[%s676] sm:$0xff]
    %v678 = vld [vmem:[%s676 + $0x8] sm:$0xff]
    %v679 = vld [vmem:[%s676 + $0x10] sm:$0xff]
    %v680 = vld [vmem:[%s676 + $0x18] sm:$0xff]
    %v681 = vld [vmem:[%s676 + $0x20] sm:$0xff]
    %v682 = vld [vmem:[%s676 + $0x28] sm:$0xff]
    %v683 = vld [vmem:[%s676 + $0x30] sm:$0xff]
    %v684 = vld [vmem:[%s676 + $0x38] sm:$0xff]
    %v685 = vld [vmem:[%s676 + $0x40] sm:$0xff]
    %v686 = vld [vmem:[%s676 + $0x48] sm:$0xff]
    %v687 = vld [vmem:[%s676 + $0x50] sm:$0xff]
    %v688 = vld [vmem:[%s676 + $0x58] sm:$0xff]
    %v701 = vunpack.c.l.b16 %v677
    %v702 = vunpack.c.h.b16 %v677
    %v703 = vunpack.c.l.b16 %v678
    %v704 = vunpack.c.h.b16 %v678
    %v705 = vunpack.c.l.b16 %v679
    %v706 = vunpack.c.h.b16 %v679
    %v707 = vunpack.c.l.b16 %v680
    %v708 = vunpack.c.h.b16 %v680
    %v709 = vunpack.c.l.b16 %v681
    %v710 = vunpack.c.h.b16 %v681
    %v711 = vunpack.c.l.b16 %v682
    %v712 = vunpack.c.h.b16 %v682
    %v713 = vunpack.c.l.b16 %v683
    %v714 = vunpack.c.h.b16 %v683
    %v715 = vunpack.c.l.b16 %v684
    %v716 = vunpack.c.h.b16 %v684
    %v717 = vunpack.c.l.b16 %v685
    %v718 = vunpack.c.h.b16 %v685
    %v719 = vunpack.c.l.b16 %v686
    %v720 = vunpack.c.h.b16 %v686
    %v721 = vunpack.c.l.b16 %v687
    %v722 = vunpack.c.h.b16 %v687
    %v723 = vunpack.c.l.b16 %v688
    %v724 = vunpack.c.h.b16 %v688
    %v725 = vpack.c.b16 %v703, %v701
    %v726 = vpack.c.b16 %v704, %v702
    %v727 = vpack.c.b16 %v707, %v705
    %v728 = vpack.c.b16 %v708, %v706
    %v729 = vpack.c.b16 %v711, %v709
    %v730 = vpack.c.b16 %v712, %v710
    %v731 = vpack.c.b16 %v715, %v713
    %v732 = vpack.c.b16 %v716, %v714
    %v733 = vpack.c.b16 %v719, %v717
    %v734 = vpack.c.b16 %v720, %v718
    %v735 = vpack.c.b16 %v723, %v721
    %v736 = vpack.c.b16 %v724, %v722
    %v750 = vsel %vm558, %v657, 0
    %v753 = vsel %vm558, %v658, 0
    %755 = vmatpush.bf16.msra.mxu0 0
    %756 = vmatpush.bf16.msra.mxu0 0
    %757 = vmatpush.bf16.msra.mxu0 %v735
    %758 = vmatpush.bf16.msra.mxu0 %v733
    %759 = vmatpush.bf16.msra.mxu0 %v731
    %760 = vmatpush.bf16.msra.mxu0 %v729
    %761 = vmatpush.bf16.msra.mxu0 %v727
    %762 = vmatpush.bf16.msra.mxu0 %v725
    %763 = vmatmul.bf16.gmra.mxu0 %v750
    %v764 = vpop.f32.mrf.mxu0
    %v765 = vadd.f32 0.0, %v764
    %v766 = vpop.f32.mrf.mxu0
    %v767 = vadd.f32 0.0, %v766
    %768 = vmatmul.bf16.gmra.mxu0 %v753
    %v769 = vpop.f32.mrf.mxu0
    %v770 = vadd.f32 0.0, %v769
    %v771 = vpop.f32.mrf.mxu0
    %772 = vdwg.mxu0
    %773 = vmatpush.bf16.msra.mxu0 0
    %774 = vmatpush.bf16.msra.mxu0 0
    %775 = vmatpush.bf16.msra.mxu0 %v736
    %776 = vmatpush.bf16.msra.mxu0 %v734
    %777 = vmatpush.bf16.msra.mxu0 %v732
    %778 = vmatpush.bf16.msra.mxu0 %v730
    %779 = vmatpush.bf16.msra.mxu0 %v728
    %780 = vmatpush.bf16.msra.mxu0 %v726
    %781 = vmatmul.bf16.gmra.mxu0 %v750
    %v782 = vpop.f32.mrf.mxu0
    %v783 = vadd.f32 0.0, %v782
    %v784 = vpop.f32.mrf.mxu0
    %v785 = vadd.f32 0.0, %v784
    %786 = vmatmul.bf16.gmra.mxu0 %v753
    %v787 = vpop.f32.mrf.mxu0
    %v788 = vadd.f32 0.0, %v787
    %v789 = vpop.f32.mrf.mxu0
    %790 = vdwg.mxu0
    %v803 = vunpack.c.l.b16 %v664
    %v804 = vunpack.c.h.b16 %v664
    %v805 = vunpack.c.l.b16 %v665
    %v806 = vunpack.c.h.b16 %v665
    %v807 = vunpack.c.l.b16 %v666
    %v808 = vunpack.c.h.b16 %v666
    %v809 = vunpack.c.l.b16 %v667
    %v810 = vunpack.c.h.b16 %v667
    %v811 = vunpack.c.l.b16 %v668
    %v812 = vunpack.c.h.b16 %v668
    %v813 = vunpack.c.l.b16 %v669
    %v814 = vunpack.c.h.b16 %v669
    %v815 = vunpack.c.l.b16 %v670
    %v816 = vunpack.c.h.b16 %v670
    %v817 = vunpack.c.l.b16 %v671
    %v818 = vunpack.c.h.b16 %v671
    %v819 = vunpack.c.l.b16 %v672
    %v820 = vunpack.c.h.b16 %v672
    %v821 = vunpack.c.l.b16 %v673
    %v822 = vunpack.c.h.b16 %v673
    %v823 = vunpack.c.l.b16 %v674
    %v824 = vunpack.c.h.b16 %v674
    %v825 = vunpack.c.l.b16 %v675
    %v826 = vunpack.c.h.b16 %v675
    %v827 = vpack.c.b16 %v805, %v803
    %v828 = vpack.c.b16 %v806, %v804
    %v829 = vpack.c.b16 %v809, %v807
    %v830 = vpack.c.b16 %v810, %v808
    %v831 = vpack.c.b16 %v813, %v811
    %v832 = vpack.c.b16 %v814, %v812
    %v833 = vpack.c.b16 %v817, %v815
    %v834 = vpack.c.b16 %v818, %v816
    %v835 = vpack.c.b16 %v821, %v819
    %v836 = vpack.c.b16 %v822, %v820
    %v837 = vpack.c.b16 %v825, %v823
    %v838 = vpack.c.b16 %v826, %v824
    %v852 = vsel %vm558, %v652, 0
    %v855 = vsel %vm558, %v653, 0
    %857 = vmatpush.bf16.msra.mxu0 0
    %858 = vmatpush.bf16.msra.mxu0 0
    %859 = vmatpush.bf16.msra.mxu0 %v837
    %860 = vmatpush.bf16.msra.mxu0 %v835
    %861 = vmatpush.bf16.msra.mxu0 %v833
    %862 = vmatpush.bf16.msra.mxu0 %v831
    %863 = vmatpush.bf16.msra.mxu0 %v829
    %864 = vmatpush.bf16.msra.mxu0 %v827
    %865 = vmatmul.bf16.gmra.mxu0 %v852
    %v866 = vpop.f32.mrf.mxu0
    %v867 = vadd.f32 %v765, %v866
    %v868 = vpop.f32.mrf.mxu0
    %v869 = vadd.f32 %v767, %v868
    %870 = vmatmul.bf16.gmra.mxu0 %v855
    %v871 = vpop.f32.mrf.mxu0
    %v872 = vadd.f32 %v770, %v871
    %v873 = vpop.f32.mrf.mxu0
    %874 = vdwg.mxu0
    %875 = vmatpush.bf16.msra.mxu0 0
    %876 = vmatpush.bf16.msra.mxu0 0
    %877 = vmatpush.bf16.msra.mxu0 %v838
    %878 = vmatpush.bf16.msra.mxu0 %v836
    %879 = vmatpush.bf16.msra.mxu0 %v834
    %880 = vmatpush.bf16.msra.mxu0 %v832
    %881 = vmatpush.bf16.msra.mxu0 %v830
    %882 = vmatpush.bf16.msra.mxu0 %v828
    %883 = vmatmul.bf16.gmra.mxu0 %v852
    %v884 = vpop.f32.mrf.mxu0
    %v885 = vadd.f32 %v783, %v884
    %v886 = vpop.f32.mrf.mxu0
    %v887 = vadd.f32 %v785, %v886
    %888 = vmatmul.bf16.gmra.mxu0 %v855
    %v889 = vpop.f32.mrf.mxu0
    %v890 = vadd.f32 %v788, %v889
    %v891 = vpop.f32.mrf.mxu0
    %892 = vdwg.mxu0
    %s893 = scalar_lea.vmem %s3, 192
    %v894 = vld [vmem:[%s893] sm:$0xff]
    %v895 = vld [vmem:[%s893 + $0x8] sm:$0xff]
    %v896 = vld [vmem:[%s893 + $0x10] sm:$0xff]
    %v897 = vld [vmem:[%s893 + $0x18] sm:$0xff]
    %v898 = vld [vmem:[%s893 + $0x20] sm:$0xff]
    %v899 = vld [vmem:[%s893 + $0x28] sm:$0xff]
    %v900 = vld [vmem:[%s893 + $0x30] sm:$0xff]
    %v901 = vld [vmem:[%s893 + $0x38] sm:$0xff]
    %v902 = vld [vmem:[%s893 + $0x40] sm:$0xff]
    %v903 = vld [vmem:[%s893 + $0x48] sm:$0xff]
    %v904 = vld [vmem:[%s893 + $0x50] sm:$0xff]
    %v905 = vld [vmem:[%s893 + $0x58] sm:$0xff]
    %v918 = vunpack.c.l.b16 %v894
    %v919 = vunpack.c.h.b16 %v894
    %v920 = vunpack.c.l.b16 %v895
    %v921 = vunpack.c.h.b16 %v895
    %v922 = vunpack.c.l.b16 %v896
    %v923 = vunpack.c.h.b16 %v896
    %v924 = vunpack.c.l.b16 %v897
    %v925 = vunpack.c.h.b16 %v897
    %v926 = vunpack.c.l.b16 %v898
    %v927 = vunpack.c.h.b16 %v898
    %v928 = vunpack.c.l.b16 %v899
    %v929 = vunpack.c.h.b16 %v899
    %v930 = vunpack.c.l.b16 %v900
    %v931 = vunpack.c.h.b16 %v900
    %v932 = vunpack.c.l.b16 %v901
    %v933 = vunpack.c.h.b16 %v901
    %v934 = vunpack.c.l.b16 %v902
    %v935 = vunpack.c.h.b16 %v902
    %v936 = vunpack.c.l.b16 %v903
    %v937 = vunpack.c.h.b16 %v903
    %v938 = vunpack.c.l.b16 %v904
    %v939 = vunpack.c.h.b16 %v904
    %v940 = vunpack.c.l.b16 %v905
    %v941 = vunpack.c.h.b16 %v905
    %v942 = vpack.c.b16 %v920, %v918
    %v943 = vpack.c.b16 %v921, %v919
    %v944 = vpack.c.b16 %v924, %v922
    %v945 = vpack.c.b16 %v925, %v923
    %v946 = vpack.c.b16 %v928, %v926
    %v947 = vpack.c.b16 %v929, %v927
    %v948 = vpack.c.b16 %v932, %v930
    %v949 = vpack.c.b16 %v933, %v931
    %v950 = vpack.c.b16 %v936, %v934
    %v951 = vpack.c.b16 %v937, %v935
    %v952 = vpack.c.b16 %v940, %v938
    %v953 = vpack.c.b16 %v941, %v939
    %v967 = vsel %vm558, %v662, 0
    %v970 = vsel %vm558, %v663, 0
    %972 = vmatpush.bf16.msra.mxu0 0
    %973 = vmatpush.bf16.msra.mxu0 0
    %974 = vmatpush.bf16.msra.mxu0 %v952
    %975 = vmatpush.bf16.msra.mxu0 %v950
    %976 = vmatpush.bf16.msra.mxu0 %v948
    %977 = vmatpush.bf16.msra.mxu0 %v946
    %978 = vmatpush.bf16.msra.mxu0 %v944
    %979 = vmatpush.bf16.msra.mxu0 %v942
    %980 = vmatmul.bf16.gmra.mxu0 %v967
    %v981 = vpop.f32.mrf.mxu0
    %v982 = vadd.f32 0.0, %v981
    %v983 = vpop.f32.mrf.mxu0
    %v984 = vadd.f32 0.0, %v983
    %985 = vmatmul.bf16.gmra.mxu0 %v970
    %v986 = vpop.f32.mrf.mxu0
    %v987 = vadd.f32 0.0, %v986
    %v988 = vpop.f32.mrf.mxu0
    %989 = vdwg.mxu0
    %990 = vmatpush.bf16.msra.mxu0 0
    %991 = vmatpush.bf16.msra.mxu0 0
    %992 = vmatpush.bf16.msra.mxu0 %v953
    %993 = vmatpush.bf16.msra.mxu0 %v951
    %994 = vmatpush.bf16.msra.mxu0 %v949
    %995 = vmatpush.bf16.msra.mxu0 %v947
    %996 = vmatpush.bf16.msra.mxu0 %v945
    %997 = vmatpush.bf16.msra.mxu0 %v943
    %998 = vmatmul.bf16.gmra.mxu0 %v967
    %v999 = vpop.f32.mrf.mxu0
    %v1000 = vadd.f32 0.0, %v999
    %v1001 = vpop.f32.mrf.mxu0
    %v1002 = vadd.f32 0.0, %v1001
    %1003 = vmatmul.bf16.gmra.mxu0 %v970
    %v1004 = vpop.f32.mrf.mxu0
    %v1005 = vadd.f32 0.0, %v1004
    %v1006 = vpop.f32.mrf.mxu0
    %1007 = vdwg.mxu0
    %v1008 = vadd.f32 %v867, %v982
    %v1009 = vadd.f32 %v885, %v1000
    %v1010 = vadd.f32 %v869, %v984
    %v1011 = vadd.f32 %v887, %v1002
    %v1012 = vadd.f32 %v872, %v987
    %v1013 = vadd.f32 %v890, %v1005
    %v1014 = vld [vmem:[%s9 + $0x2] sm:$0x3]
    %v1016 = vperm.slane %v1014, 0
    %v1017 = vperm.slane %v1014, 1
    %v1020 = vadd.f32 %v1008, %v1016
    %v1021 = vadd.f32 %v1009, %v1017
    %v1022 = vadd.f32 %v1010, %v1016
    %v1023 = vadd.f32 %v1011, %v1017
    %v1024 = vadd.f32 %v1012, %v1016
    %v1025 = vadd.f32 %v1013, %v1017
    %v1026 = vmax.f32 %v1020, 0.0
    %v1027 = vmax.f32 %v1021, 0.0
    %v1028 = vmax.f32 %v1022, 0.0
    %v1029 = vmax.f32 %v1023, 0.0
    %v1030 = vmax.f32 %v1024, 0.0
    %v1031 = vmax.f32 %v1025, 0.0
    %1032 = vst [vmem:[#allocation5] sm:$0xff] %v1026
    %vm1033 = vcmask 261120
    %1034 = vst.msk [vmem:[#allocation5 + $0x8] sm:$0xff] %vm1033, %v1027
    %1035 = vst [vmem:[#allocation5 + $0x10] sm:$0xff] %v1028
    %1036 = vst.msk [vmem:[#allocation5 + $0x18] sm:$0xff] %vm1033, %v1029
    %1037 = vst [vmem:[#allocation5 + $0x20] sm:$0x3f] %v1030
    %vm1038 = vcmask 259072
    %1039 = vst.msk [vmem:[#allocation5 + $0x28] sm:$0x3f] %vm1038, %v1031
    %v1040 = vld [vmem:[#allocation5] sm:$0xff]
    %v1041 = vld [vmem:[#allocation5 + $0x8] sm:$0xff]
    %v1042 = vld [vmem:[#allocation5 + $0x10] sm:$0xff]
    %v1043 = vld [vmem:[#allocation5 + $0x18] sm:$0xff]
    %v1044 = vld [vmem:[#allocation5 + $0x20] sm:$0x3f]
    %v1045 = vld [vmem:[#allocation5 + $0x28] sm:$0x3f]
    %1052 = vrot.lane.b32.xlu0 %v1040, 127
    %v1053 = vpop.permute.xlu0 %1052
    %1054 = vrot.lane.b32.xlu0 %v1041, 127
    %v1055 = vpop.permute.xlu0 %1054
    %1056 = vrot.lane.b32.xlu0 %v1042, 127
    %v1057 = vpop.permute.xlu0 %1056
    %1058 = vrot.lane.b32.xlu0 %v1043, 127
    %v1059 = vpop.permute.xlu0 %1058
    %1060 = vrot.lane.b32.xlu0 %v1044, 127
    %v1061 = vpop.permute.xlu0 %1060
    %1062 = vrot.lane.b32.xlu0 %v1045, 127
    %v1063 = vpop.permute.xlu0 %1062
    %v1064 = vsel %vm306, %v1053, %v1055
    %v1065 = vsel %vm306, %v1057, %v1059
    %v1066 = vsel %vm306, %v1061, %v1063
    %v1073 = vmax.f32 %v1040, %v1064
    %v1074 = vmax.f32 %v1041, %v1055
    %v1075 = vmax.f32 %v1042, %v1065
    %v1076 = vmax.f32 %v1043, %v1059
    %v1077 = vmax.f32 %v1044, %v1066
    %v1078 = vmax.f32 %v1045, %v1063
    %v1079 = vld [vmem:[%s4] sm:$0xf]
    %v1080 = vld [vmem:[%s4 + $0x4] sm:$0xf]
    %v1081 = vld [vmem:[%s4 + $0x8] sm:$0xf]
    %v1082 = vld [vmem:[%s4 + $0xc] sm:$0xf]
    %v1083 = vld [vmem:[%s4 + $0x10] sm:$0xf]
    %v1084 = vld [vmem:[%s4 + $0x14] sm:$0xf]
    %v1085 = vld [vmem:[%s4 + $0x18] sm:$0xf]
    %v1086 = vld [vmem:[%s4 + $0x1c] sm:$0xf]
    %v1087 = vld [vmem:[%s4 + $0x20] sm:$0xf]
    %v1088 = vld [vmem:[%s4 + $0x24] sm:$0xf]
    %v1089 = vld [vmem:[%s4 + $0x28] sm:$0xf]
    %v1090 = vld [vmem:[%s4 + $0x2c] sm:$0xf]
    %v1091 = vld [vmem:[%s4 + $0x30] sm:$0xf]
    %v1092 = vld [vmem:[%s4 + $0x34] sm:$0xf]
    %v1093 = vld [vmem:[%s4 + $0x38] sm:$0xf]
    %v1094 = vld [vmem:[%s4 + $0x3c] sm:$0xf]
    %v1095 = vld [vmem:[%s4 + $0x40] sm:$0xf]
    %v1096 = vld [vmem:[%s4 + $0x44] sm:$0xf]
    %v1097 = vld [vmem:[%s4 + $0x48] sm:$0xf]
    %v1098 = vld [vmem:[%s4 + $0x4c] sm:$0xf]
    %v1099 = vunpack.c.l.bf16 %v1079
    %v1100 = vunpack.c.l.bf16 %v1080
    %v1101 = vunpack.c.l.bf16 %v1081
    %v1102 = vunpack.c.l.bf16 %v1082
    %v1103 = vunpack.c.l.bf16 %v1083
    %v1104 = vunpack.c.l.bf16 %v1084
    %v1105 = vunpack.c.l.bf16 %v1085
    %v1106 = vunpack.c.l.bf16 %v1086
    %v1107 = vunpack.c.l.bf16 %v1087
    %v1108 = vunpack.c.l.bf16 %v1088
    %v1109 = vunpack.c.l.bf16 %v1089
    %v1110 = vunpack.c.l.bf16 %v1090
    %v1111 = vunpack.c.l.bf16 %v1091
    %v1112 = vunpack.c.l.bf16 %v1092
    %v1113 = vunpack.c.l.bf16 %v1093
    %v1114 = vunpack.c.l.bf16 %v1094
    %v1115 = vunpack.c.l.bf16 %v1095
    %v1116 = vunpack.c.l.bf16 %v1096
    %v1117 = vunpack.c.l.bf16 %v1097
    %v1118 = vunpack.c.l.bf16 %v1098
    %vm1119 = vcmask 252928
    %v1121 = vsel %vm1119, %v1074, 0
    %v1124 = vsel %vm1119, %v1076, 0
    %v1127 = vsel %vm1119, %v1078, 0
    %vm1129 = vcmask 1046528
    %v1131 = vsel %vm1129, %v1118, 0
    %1133 = vmatpush.msra.mxu0 %v1114
    %1134 = vmatpush.msra.mxu0 %v1113
    %1135 = vmatpush.msra.mxu0 %v1112
    %1136 = vmatpush.msra.mxu0 %v1111
    %1137 = vmatpush.msra.mxu0 %v1110
    %1138 = vmatpush.msra.mxu0 %v1109
    %1139 = vmatpush.msra.mxu0 %v1108
    %1140 = vmatpush.msra.mxu0 %v1107
    %1141 = vmatpush.msra.mxu0 %v1106
    %1142 = vmatpush.msra.mxu0 %v1105
    %1143 = vmatpush.msra.mxu0 %v1104
    %1144 = vmatpush.msra.mxu0 %v1103
    %1145 = vmatpush.msra.mxu0 %v1102
    %1146 = vmatpush.msra.mxu0 %v1101
    %1147 = vmatpush.msra.mxu0 %v1100
    %1148 = vmatpush.msra.mxu0 %v1099
    %1149 = vmatmul.f32.gmra.mxu0 %v1073
    %v1150 = vpop.f32.mrf.mxu0
    %v1151 = vadd.f32 0.0, %v1150
    %1152 = vmatmul.f32.gmra.mxu0 %v1075
    %v1153 = vpop.f32.mrf.mxu0
    %v1154 = vadd.f32 0.0, %v1153
    %1155 = vmatmul.f32.gmra.mxu0 %v1077
    %v1156 = vpop.f32.mrf.mxu0
    %v1157 = vadd.f32 0.0, %v1156
    %1158 = vdwg.mxu0
    %1159 = vmatpush.msra.mxu0 0.0
    %1160 = vmatpush.msra.mxu0 0.0
    %1161 = vmatpush.msra.mxu0 0.0
    %1162 = vmatpush.msra.mxu0 0.0
    %1163 = vmatpush.msra.mxu0 0.0
    %1164 = vmatpush.msra.mxu0 0.0
    %1165 = vmatpush.msra.mxu0 0.0
    %1166 = vmatpush.msra.mxu0 0.0
    %1167 = vmatpush.msra.mxu0 0.0
    %1168 = vmatpush.msra.mxu0 0.0
    %1169 = vmatpush.msra.mxu0 0.0
    %1170 = vmatpush.msra.mxu0 0.0
    %1171 = vmatpush.msra.mxu0 %v1131
    %1172 = vmatpush.msra.mxu0 %v1117
    %1173 = vmatpush.msra.mxu0 %v1116
    %1174 = vmatpush.msra.mxu0 %v1115
    %1175 = vmatmul.f32.gmra.mxu0 %v1121
    %v1176 = vpop.f32.mrf.mxu0
    %v1177 = vadd.f32 %v1151, %v1176
    %1178 = vmatmul.f32.gmra.mxu0 %v1124
    %v1179 = vpop.f32.mrf.mxu0
    %v1180 = vadd.f32 %v1154, %v1179
    %1181 = vmatmul.f32.gmra.mxu0 %v1127
    %v1182 = vpop.f32.mrf.mxu0
    %v1183 = vadd.f32 %v1157, %v1182
    %1184 = vdwg.mxu0
    %vm1185 = vcmask 654336
    %1186 = vst.msk [vmem:[#allocation6] sm:$0xff] %vm1185, %v1177
    %1187 = vst.msk [vmem:[#allocation6 + $0x8] sm:$0xff] %vm1185, %v1180
    %vm1188 = vcmask 652288
    %1189 = vst.msk [vmem:[#allocation6 + $0x10] sm:$0x3f] %vm1188, %v1183
    %v1190 = vld [vmem:[#allocation6] sm:$0xff]
    %v1191 = vld [vmem:[#allocation6 + $0x8] sm:$0xff]
    %v1192 = vld [vmem:[#allocation6 + $0x10] sm:$0x1f]
    %v1193 = vld [vmem:[#allocation6 + $0x1] sm:$0xff]
    %v1194 = vld [vmem:[#allocation6 + $0x9] sm:$0xff]
    %v1195 = vld [vmem:[#allocation6 + $0x11] sm:$0x1f]
    %v1196 = vmax.f32 %v1190, %v1193
    %v1197 = vmax.f32 %v1191, %v1194
    %v1198 = vmax.f32 %v1192, %v1195
    %v1199 = vld [vmem:[%s5 + $0xc] sm:$0x1]
    %v1200 = vunpack.c.l.bf16 %v1199
    %vm1201 = vcmask 171008
    %v1203 = vsel %vm1201, %v1200, 0
    %vm1205 = vcmask 1044480
    %v1207 = vsel %vm1205, %v1198, 0
    %1209 = vmatpush.msra.mxu0 0.0
    %1210 = vmatpush.msra.mxu0 0.0
    %1211 = vmatpush.msra.mxu0 0.0
    %1212 = vmatpush.msra.mxu0 0.0
    %1213 = vmatpush.msra.mxu0 0.0
    %1214 = vmatpush.msra.mxu0 0.0
    %1215 = vmatpush.msra.mxu0 0.0
    %1216 = vmatpush.msra.mxu0 0.0
    %1217 = vmatpush.msra.mxu0 0.0
    %1218 = vmatpush.msra.mxu0 0.0
    %1219 = vmatpush.msra.mxu0 0.0
    %1220 = vmatpush.msra.mxu0 0.0
    %1221 = vmatpush.msra.mxu0 0.0
    %1222 = vmatpush.msra.mxu0 %v1207
    %1223 = vmatpush.msra.mxu0 %v1197
    %1224 = vmatpush.msra.mxu0 %v1196
    %1225 = vmatmul.f32.gmra.mxu0 %v1203
    %v1226 = vpop.f32.mrf.mxu0
    %v1227 = vadd.f32 0.0, %v1226
    %1228 = vdwg.mxu0
    %v1229 = vpack.c.bf16 %v1227, %v1227
    %v1230 = vld [vmem:[%s6] sm:$0xff]
    %v1231 = vld [vmem:[%s6 + $0x8] sm:$0xff]
    %v1232 = vld [vmem:[%s6 + $0x10] sm:$0xff]
    %v1233 = vld [vmem:[%s6 + $0x18] sm:$0xff]
    %v1234 = vld [vmem:[%s6 + $0x20] sm:$0xff]
    %v1235 = vld [vmem:[%s6 + $0x28] sm:$0xff]
    %v1236 = vld [vmem:[%s6 + $0x30] sm:$0xff]
    %v1237 = vld [vmem:[%s6 + $0x38] sm:$0xff]
    %v1238 = vld [vmem:[%s6 + $0x40] sm:$0xff]
    %v1239 = vld [vmem:[%s6 + $0x48] sm:$0xff]
    %v1240 = vld [vmem:[%s5 + $0xc] sm:$0x2]
    %v1241 = vunpack.c.l.bf16 %v1240
    %v1243 = vrot.slane %v1241, 2
    %v1244 = vsel %vm1201, %v1243, 0
    %1246 = vmatpush.msra.mxu0 0.0
    %1247 = vmatpush.msra.mxu0 0.0
    %1248 = vmatpush.msra.mxu0 0.0
    %1249 = vmatpush.msra.mxu0 0.0
    %1250 = vmatpush.msra.mxu0 0.0
    %1251 = vmatpush.msra.mxu0 0.0
    %1252 = vmatpush.msra.mxu0 0.0
    %1253 = vmatpush.msra.mxu0 0.0
    %1254 = vmatpush.msra.mxu0 0.0
    %1255 = vmatpush.msra.mxu0 0.0
    %1256 = vmatpush.msra.mxu0 0.0
    %1257 = vmatpush.msra.mxu0 0.0
    %1258 = vmatpush.msra.mxu0 0.0
    %1259 = vmatpush.msra.mxu0 %v1207
    %1260 = vmatpush.msra.mxu0 %v1197
    %1261 = vmatpush.msra.mxu0 %v1196
    %1262 = vmatmul.f32.gmra.mxu0 %v1244
    %v1263 = vpop.f32.mrf.mxu0
    %v1264 = vadd.f32 0.0, %v1263
    %1265 = vdwg.mxu0
    %v1266 = vpack.c.bf16 %v1264, %v1264
    %s1267 = scalar_lea.vmem %s6, 80
    %v1268 = vld [vmem:[%s1267] sm:$0xff]
    %v1269 = vld [vmem:[%s1267 + $0x8] sm:$0xff]
    %v1270 = vld [vmem:[%s1267 + $0x10] sm:$0xff]
    %v1271 = vld [vmem:[%s1267 + $0x18] sm:$0xff]
    %v1272 = vld [vmem:[%s1267 + $0x20] sm:$0xff]
    %v1273 = vld [vmem:[%s1267 + $0x28] sm:$0xff]
    %v1274 = vld [vmem:[%s1267 + $0x30] sm:$0xff]
    %v1275 = vld [vmem:[%s1267 + $0x38] sm:$0xff]
    %v1276 = vld [vmem:[%s1267 + $0x40] sm:$0xff]
    %v1277 = vld [vmem:[%s1267 + $0x48] sm:$0xff]
    %v1288 = vunpack.c.l.b16 %v1268
    %v1289 = vunpack.c.h.b16 %v1268
    %v1290 = vunpack.c.l.b16 %v1269
    %v1291 = vunpack.c.h.b16 %v1269
    %v1292 = vunpack.c.l.b16 %v1270
    %v1293 = vunpack.c.h.b16 %v1270
    %v1294 = vunpack.c.l.b16 %v1271
    %v1295 = vunpack.c.h.b16 %v1271
    %v1296 = vunpack.c.l.b16 %v1272
    %v1297 = vunpack.c.h.b16 %v1272
    %v1298 = vunpack.c.l.b16 %v1273
    %v1299 = vunpack.c.h.b16 %v1273
    %v1300 = vunpack.c.l.b16 %v1274
    %v1301 = vunpack.c.h.b16 %v1274
    %v1302 = vunpack.c.l.b16 %v1275
    %v1303 = vunpack.c.h.b16 %v1275
    %v1304 = vunpack.c.l.b16 %v1276
    %v1305 = vunpack.c.h.b16 %v1276
    %v1306 = vunpack.c.l.b16 %v1277
    %v1307 = vunpack.c.h.b16 %v1277
    %v1308 = vpack.c.b16 %v1290, %v1288
    %v1309 = vpack.c.b16 %v1291, %v1289
    %v1310 = vpack.c.b16 %v1294, %v1292
    %v1311 = vpack.c.b16 %v1295, %v1293
    %v1312 = vpack.c.b16 %v1298, %v1296
    %v1313 = vpack.c.b16 %v1299, %v1297
    %v1314 = vpack.c.b16 %v1302, %v1300
    %v1315 = vpack.c.b16 %v1303, %v1301
    %v1316 = vpack.c.b16 %v1306, %v1304
    %v1317 = vpack.c.b16 %v1307, %v1305
    %v1329 = vsel %vm1185, %v1266, 0
    %1331 = vmatpush.bf16.msra.mxu0 0
    %1332 = vmatpush.bf16.msra.mxu0 0
    %1333 = vmatpush.bf16.msra.mxu0 0
    %1334 = vmatpush.bf16.msra.mxu0 %v1316
    %1335 = vmatpush.bf16.msra.mxu0 %v1314
    %1336 = vmatpush.bf16.msra.mxu0 %v1312
    %1337 = vmatpush.bf16.msra.mxu0 %v1310
    %1338 = vmatpush.bf16.msra.mxu0 %v1308
    %1339 = vmatmul.bf16.gmra.mxu0 %v1329
    %v1340 = vpop.f32.mrf.mxu0
    %v1341 = vadd.f32 0.0, %v1340
    %v1342 = vpop.f32.mrf.mxu0
    %1343 = vdwg.mxu0
    %1344 = vmatpush.bf16.msra.mxu0 0
    %1345 = vmatpush.bf16.msra.mxu0 0
    %1346 = vmatpush.bf16.msra.mxu0 0
    %1347 = vmatpush.bf16.msra.mxu0 %v1317
    %1348 = vmatpush.bf16.msra.mxu0 %v1315
    %1349 = vmatpush.bf16.msra.mxu0 %v1313
    %1350 = vmatpush.bf16.msra.mxu0 %v1311
    %1351 = vmatpush.bf16.msra.mxu0 %v1309
    %1352 = vmatmul.bf16.gmra.mxu0 %v1329
    %v1353 = vpop.f32.mrf.mxu0
    %v1354 = vadd.f32 0.0, %v1353
    %v1355 = vpop.f32.mrf.mxu0
    %1356 = vdwg.mxu0
    %v1367 = vunpack.c.l.b16 %v1230
    %v1368 = vunpack.c.h.b16 %v1230
    %v1369 = vunpack.c.l.b16 %v1231
    %v1370 = vunpack.c.h.b16 %v1231
    %v1371 = vunpack.c.l.b16 %v1232
    %v1372 = vunpack.c.h.b16 %v1232
    %v1373 = vunpack.c.l.b16 %v1233
    %v1374 = vunpack.c.h.b16 %v1233
    %v1375 = vunpack.c.l.b16 %v1234
    %v1376 = vunpack.c.h.b16 %v1234
    %v1377 = vunpack.c.l.b16 %v1235
    %v1378 = vunpack.c.h.b16 %v1235
    %v1379 = vunpack.c.l.b16 %v1236
    %v1380 = vunpack.c.h.b16 %v1236
    %v1381 = vunpack.c.l.b16 %v1237
    %v1382 = vunpack.c.h.b16 %v1237
    %v1383 = vunpack.c.l.b16 %v1238
    %v1384 = vunpack.c.h.b16 %v1238
    %v1385 = vunpack.c.l.b16 %v1239
    %v1386 = vunpack.c.h.b16 %v1239
    %v1387 = vpack.c.b16 %v1369, %v1367
    %v1388 = vpack.c.b16 %v1370, %v1368
    %v1389 = vpack.c.b16 %v1373, %v1371
    %v1390 = vpack.c.b16 %v1374, %v1372
    %v1391 = vpack.c.b16 %v1377, %v1375
    %v1392 = vpack.c.b16 %v1378, %v1376
    %v1393 = vpack.c.b16 %v1381, %v1379
    %v1394 = vpack.c.b16 %v1382, %v1380
    %v1395 = vpack.c.b16 %v1385, %v1383
    %v1396 = vpack.c.b16 %v1386, %v1384
    %v1408 = vsel %vm1185, %v1229, 0
    %1410 = vmatpush.bf16.msra.mxu0 0
    %1411 = vmatpush.bf16.msra.mxu0 0
    %1412 = vmatpush.bf16.msra.mxu0 0
    %1413 = vmatpush.bf16.msra.mxu0 %v1395
    %1414 = vmatpush.bf16.msra.mxu0 %v1393
    %1415 = vmatpush.bf16.msra.mxu0 %v1391
    %1416 = vmatpush.bf16.msra.mxu0 %v1389
    %1417 = vmatpush.bf16.msra.mxu0 %v1387
    %1418 = vmatmul.bf16.gmra.mxu0 %v1408
    %v1419 = vpop.f32.mrf.mxu0
    %v1420 = vadd.f32 %v1341, %v1419
    %v1421 = vpop.f32.mrf.mxu0
    %1422 = vdwg.mxu0
    %1423 = vmatpush.bf16.msra.mxu0 0
    %1424 = vmatpush.bf16.msra.mxu0 0
    %1425 = vmatpush.bf16.msra.mxu0 0
    %1426 = vmatpush.bf16.msra.mxu0 %v1396
    %1427 = vmatpush.bf16.msra.mxu0 %v1394
    %1428 = vmatpush.bf16.msra.mxu0 %v1392
    %1429 = vmatpush.bf16.msra.mxu0 %v1390
    %1430 = vmatpush.bf16.msra.mxu0 %v1388
    %1431 = vmatmul.bf16.gmra.mxu0 %v1408
    %v1432 = vpop.f32.mrf.mxu0
    %v1433 = vadd.f32 %v1354, %v1432
    %v1434 = vpop.f32.mrf.mxu0
    %1435 = vdwg.mxu0
    %v1436 = vld [vmem:[%s5 + $0xc] sm:$0x4]
    %v1437 = vunpack.c.l.bf16 %v1436
    %v1439 = vrot.slane %v1437, 4
    %v1440 = vsel %vm1201, %v1439, 0
    %1442 = vmatpush.msra.mxu0 0.0
    %1443 = vmatpush.msra.mxu0 0.0
    %1444 = vmatpush.msra.mxu0 0.0
    %1445 = vmatpush.msra.mxu0 0.0
    %1446 = vmatpush.msra.mxu0 0.0
    %1447 = vmatpush.msra.mxu0 0.0
    %1448 = vmatpush.msra.mxu0 0.0
    %1449 = vmatpush.msra.mxu0 0.0
    %1450 = vmatpush.msra.mxu0 0.0
    %1451 = vmatpush.msra.mxu0 0.0
    %1452 = vmatpush.msra.mxu0 0.0
    %1453 = vmatpush.msra.mxu0 0.0
    %1454 = vmatpush.msra.mxu0 0.0
    %1455 = vmatpush.msra.mxu0 %v1207
    %1456 = vmatpush.msra.mxu0 %v1197
    %1457 = vmatpush.msra.mxu0 %v1196
    %1458 = vmatmul.f32.gmra.mxu0 %v1440
    %v1459 = vpop.f32.mrf.mxu0
    %v1460 = vadd.f32 0.0, %v1459
    %1461 = vdwg.mxu0
    %v1462 = vpack.c.bf16 %v1460, %v1460
    %s1463 = scalar_lea.vmem %s6, 160
    %v1464 = vld [vmem:[%s1463] sm:$0xff]
    %v1465 = vld [vmem:[%s1463 + $0x8] sm:$0xff]
    %v1466 = vld [vmem:[%s1463 + $0x10] sm:$0xff]
    %v1467 = vld [vmem:[%s1463 + $0x18] sm:$0xff]
    %v1468 = vld [vmem:[%s1463 + $0x20] sm:$0xff]
    %v1469 = vld [vmem:[%s1463 + $0x28] sm:$0xff]
    %v1470 = vld [vmem:[%s1463 + $0x30] sm:$0xff]
    %v1471 = vld [vmem:[%s1463 + $0x38] sm:$0xff]
    %v1472 = vld [vmem:[%s1463 + $0x40] sm:$0xff]
    %v1473 = vld [vmem:[%s1463 + $0x48] sm:$0xff]
    %v1484 = vunpack.c.l.b16 %v1464
    %v1485 = vunpack.c.h.b16 %v1464
    %v1486 = vunpack.c.l.b16 %v1465
    %v1487 = vunpack.c.h.b16 %v1465
    %v1488 = vunpack.c.l.b16 %v1466
    %v1489 = vunpack.c.h.b16 %v1466
    %v1490 = vunpack.c.l.b16 %v1467
    %v1491 = vunpack.c.h.b16 %v1467
    %v1492 = vunpack.c.l.b16 %v1468
    %v1493 = vunpack.c.h.b16 %v1468
    %v1494 = vunpack.c.l.b16 %v1469
    %v1495 = vunpack.c.h.b16 %v1469
    %v1496 = vunpack.c.l.b16 %v1470
    %v1497 = vunpack.c.h.b16 %v1470
    %v1498 = vunpack.c.l.b16 %v1471
    %v1499 = vunpack.c.h.b16 %v1471
    %v1500 = vunpack.c.l.b16 %v1472
    %v1501 = vunpack.c.h.b16 %v1472
    %v1502 = vunpack.c.l.b16 %v1473
    %v1503 = vunpack.c.h.b16 %v1473
    %v1504 = vpack.c.b16 %v1486, %v1484
    %v1505 = vpack.c.b16 %v1487, %v1485
    %v1506 = vpack.c.b16 %v1490, %v1488
    %v1507 = vpack.c.b16 %v1491, %v1489
    %v1508 = vpack.c.b16 %v1494, %v1492
    %v1509 = vpack.c.b16 %v1495, %v1493
    %v1510 = vpack.c.b16 %v1498, %v1496
    %v1511 = vpack.c.b16 %v1499, %v1497
    %v1512 = vpack.c.b16 %v1502, %v1500
    %v1513 = vpack.c.b16 %v1503, %v1501
    %v1525 = vsel %vm1185, %v1462, 0
    %1527 = vmatpush.bf16.msra.mxu0 0
    %1528 = vmatpush.bf16.msra.mxu0 0
    %1529 = vmatpush.bf16.msra.mxu0 0
    %1530 = vmatpush.bf16.msra.mxu0 %v1512
    %1531 = vmatpush.bf16.msra.mxu0 %v1510
    %1532 = vmatpush.bf16.msra.mxu0 %v1508
    %1533 = vmatpush.bf16.msra.mxu0 %v1506
    %1534 = vmatpush.bf16.msra.mxu0 %v1504
    %1535 = vmatmul.bf16.gmra.mxu0 %v1525
    %v1536 = vpop.f32.mrf.mxu0
    %v1537 = vadd.f32 0.0, %v1536
    %v1538 = vpop.f32.mrf.mxu0
    %1539 = vdwg.mxu0
    %1540 = vmatpush.bf16.msra.mxu0 0
    %1541 = vmatpush.bf16.msra.mxu0 0
    %1542 = vmatpush.bf16.msra.mxu0 0
    %1543 = vmatpush.bf16.msra.mxu0 %v1513
    %1544 = vmatpush.bf16.msra.mxu0 %v1511
    %1545 = vmatpush.bf16.msra.mxu0 %v1509
    %1546 = vmatpush.bf16.msra.mxu0 %v1507
    %1547 = vmatpush.bf16.msra.mxu0 %v1505
    %1548 = vmatmul.bf16.gmra.mxu0 %v1525
    %v1549 = vpop.f32.mrf.mxu0
    %v1550 = vadd.f32 0.0, %v1549
    %v1551 = vpop.f32.mrf.mxu0
    %1552 = vdwg.mxu0
    %v1553 = vadd.f32 %v1420, %v1537
    %v1554 = vadd.f32 %v1433, %v1550
    %v1555 = vld [vmem:[%s5 + $0xc] sm:$0x8]
    %v1556 = vunpack.c.l.bf16 %v1555
    %v1558 = vrot.slane %v1556, 6
    %v1559 = vsel %vm1201, %v1558, 0
    %1561 = vmatpush.msra.mxu0 0.0
    %1562 = vmatpush.msra.mxu0 0.0
    %1563 = vmatpush.msra.mxu0 0.0
    %1564 = vmatpush.msra.mxu0 0.0
    %1565 = vmatpush.msra.mxu0 0.0
    %1566 = vmatpush.msra.mxu0 0.0
    %1567 = vmatpush.msra.mxu0 0.0
    %1568 = vmatpush.msra.mxu0 0.0
    %1569 = vmatpush.msra.mxu0 0.0
    %1570 = vmatpush.msra.mxu0 0.0
    %1571 = vmatpush.msra.mxu0 0.0
    %1572 = vmatpush.msra.mxu0 0.0
    %1573 = vmatpush.msra.mxu0 0.0
    %1574 = vmatpush.msra.mxu0 %v1207
    %1575 = vmatpush.msra.mxu0 %v1197
    %1576 = vmatpush.msra.mxu0 %v1196
    %1577 = vmatmul.f32.gmra.mxu0 %v1559
    %v1578 = vpop.f32.mrf.mxu0
    %v1579 = vadd.f32 0.0, %v1578
    %1580 = vdwg.mxu0
    %v1581 = vpack.c.bf16 %v1579, %v1579
    %s1582 = scalar_lea.vmem %s6, 240
    %v1583 = vld [vmem:[%s1582] sm:$0xff]
    %v1584 = vld [vmem:[%s1582 + $0x8] sm:$0xff]
    %v1585 = vld [vmem:[%s1582 + $0x10] sm:$0xff]
    %v1586 = vld [vmem:[%s1582 + $0x18] sm:$0xff]
    %v1587 = vld [vmem:[%s1582 + $0x20] sm:$0xff]
    %v1588 = vld [vmem:[%s1582 + $0x28] sm:$0xff]
    %v1589 = vld [vmem:[%s1582 + $0x30] sm:$0xff]
    %v1590 = vld [vmem:[%s1582 + $0x38] sm:$0xff]
    %v1591 = vld [vmem:[%s1582 + $0x40] sm:$0xff]
    %v1592 = vld [vmem:[%s1582 + $0x48] sm:$0xff]
    %v1603 = vunpack.c.l.b16 %v1583
    %v1604 = vunpack.c.h.b16 %v1583
    %v1605 = vunpack.c.l.b16 %v1584
    %v1606 = vunpack.c.h.b16 %v1584
    %v1607 = vunpack.c.l.b16 %v1585
    %v1608 = vunpack.c.h.b16 %v1585
    %v1609 = vunpack.c.l.b16 %v1586
    %v1610 = vunpack.c.h.b16 %v1586
    %v1611 = vunpack.c.l.b16 %v1587
    %v1612 = vunpack.c.h.b16 %v1587
    %v1613 = vunpack.c.l.b16 %v1588
    %v1614 = vunpack.c.h.b16 %v1588
    %v1615 = vunpack.c.l.b16 %v1589
    %v1616 = vunpack.c.h.b16 %v1589
    %v1617 = vunpack.c.l.b16 %v1590
    %v1618 = vunpack.c.h.b16 %v1590
    %v1619 = vunpack.c.l.b16 %v1591
    %v1620 = vunpack.c.h.b16 %v1591
    %v1621 = vunpack.c.l.b16 %v1592
    %v1622 = vunpack.c.h.b16 %v1592
    %v1623 = vpack.c.b16 %v1605, %v1603
    %v1624 = vpack.c.b16 %v1606, %v1604
    %v1625 = vpack.c.b16 %v1609, %v1607
    %v1626 = vpack.c.b16 %v1610, %v1608
    %v1627 = vpack.c.b16 %v1613, %v1611
    %v1628 = vpack.c.b16 %v1614, %v1612
    %v1629 = vpack.c.b16 %v1617, %v1615
    %v1630 = vpack.c.b16 %v1618, %v1616
    %v1631 = vpack.c.b16 %v1621, %v1619
    %v1632 = vpack.c.b16 %v1622, %v1620
    %v1644 = vsel %vm1185, %v1581, 0
    %1646 = vmatpush.bf16.msra.mxu0 0
    %1647 = vmatpush.bf16.msra.mxu0 0
    %1648 = vmatpush.bf16.msra.mxu0 0
    %1649 = vmatpush.bf16.msra.mxu0 %v1631
    %1650 = vmatpush.bf16.msra.mxu0 %v1629
    %1651 = vmatpush.bf16.msra.mxu0 %v1627
    %1652 = vmatpush.bf16.msra.mxu0 %v1625
    %1653 = vmatpush.bf16.msra.mxu0 %v1623
    %1654 = vmatmul.bf16.gmra.mxu0 %v1644
    %v1655 = vpop.f32.mrf.mxu0
    %v1656 = vadd.f32 0.0, %v1655
    %v1657 = vpop.f32.mrf.mxu0
    %1658 = vdwg.mxu0
    %1659 = vmatpush.bf16.msra.mxu0 0
    %1660 = vmatpush.bf16.msra.mxu0 0
    %1661 = vmatpush.bf16.msra.mxu0 0
    %1662 = vmatpush.bf16.msra.mxu0 %v1632
    %1663 = vmatpush.bf16.msra.mxu0 %v1630
    %1664 = vmatpush.bf16.msra.mxu0 %v1628
    %1665 = vmatpush.bf16.msra.mxu0 %v1626
    %1666 = vmatpush.bf16.msra.mxu0 %v1624
    %1667 = vmatmul.bf16.gmra.mxu0 %v1644
    %v1668 = vpop.f32.mrf.mxu0
    %v1669 = vadd.f32 0.0, %v1668
    %v1670 = vpop.f32.mrf.mxu0
    %1671 = vdwg.mxu0
    %v1672 = vadd.f32 %v1553, %v1656
    %v1673 = vadd.f32 %v1554, %v1669
    %v1674 = vld [vmem:[%s5 + $0x10] sm:$0x1]
    %v1675 = vunpack.c.l.bf16 %v1674
    %v1677 = vsel %vm1201, %v1675, 0
    %1679 = vmatpush.msra.mxu0 0.0
    %1680 = vmatpush.msra.mxu0 0.0
    %1681 = vmatpush.msra.mxu0 0.0
    %1682 = vmatpush.msra.mxu0 0.0
    %1683 = vmatpush.msra.mxu0 0.0
    %1684 = vmatpush.msra.mxu0 0.0
    %1685 = vmatpush.msra.mxu0 0.0
    %1686 = vmatpush.msra.mxu0 0.0
    %1687 = vmatpush.msra.mxu0 0.0
    %1688 = vmatpush.msra.mxu0 0.0
    %1689 = vmatpush.msra.mxu0 0.0
    %1690 = vmatpush.msra.mxu0 0.0
    %1691 = vmatpush.msra.mxu0 0.0
    %1692 = vmatpush.msra.mxu0 %v1207
    %1693 = vmatpush.msra.mxu0 %v1197
    %1694 = vmatpush.msra.mxu0 %v1196
    %1695 = vmatmul.f32.gmra.mxu0 %v1677
    %v1696 = vpop.f32.mrf.mxu0
    %v1697 = vadd.f32 0.0, %v1696
    %1698 = vdwg.mxu0
    %v1699 = vpack.c.bf16 %v1697, %v1697
    %s1700 = scalar_lea.vmem %s6, 320
    %v1701 = vld [vmem:[%s1700] sm:$0xff]
    %v1702 = vld [vmem:[%s1700 + $0x8] sm:$0xff]
    %v1703 = vld [vmem:[%s1700 + $0x10] sm:$0xff]
    %v1704 = vld [vmem:[%s1700 + $0x18] sm:$0xff]
    %v1705 = vld [vmem:[%s1700 + $0x20] sm:$0xff]
    %v1706 = vld [vmem:[%s1700 + $0x28] sm:$0xff]
    %v1707 = vld [vmem:[%s1700 + $0x30] sm:$0xff]
    %v1708 = vld [vmem:[%s1700 + $0x38] sm:$0xff]
    %v1709 = vld [vmem:[%s1700 + $0x40] sm:$0xff]
    %v1710 = vld [vmem:[%s1700 + $0x48] sm:$0xff]
    %v1721 = vunpack.c.l.b16 %v1701
    %v1722 = vunpack.c.h.b16 %v1701
    %v1723 = vunpack.c.l.b16 %v1702
    %v1724 = vunpack.c.h.b16 %v1702
    %v1725 = vunpack.c.l.b16 %v1703
    %v1726 = vunpack.c.h.b16 %v1703
    %v1727 = vunpack.c.l.b16 %v1704
    %v1728 = vunpack.c.h.b16 %v1704
    %v1729 = vunpack.c.l.b16 %v1705
    %v1730 = vunpack.c.h.b16 %v1705
    %v1731 = vunpack.c.l.b16 %v1706
    %v1732 = vunpack.c.h.b16 %v1706
    %v1733 = vunpack.c.l.b16 %v1707
    %v1734 = vunpack.c.h.b16 %v1707
    %v1735 = vunpack.c.l.b16 %v1708
    %v1736 = vunpack.c.h.b16 %v1708
    %v1737 = vunpack.c.l.b16 %v1709
    %v1738 = vunpack.c.h.b16 %v1709
    %v1739 = vunpack.c.l.b16 %v1710
    %v1740 = vunpack.c.h.b16 %v1710
    %v1741 = vpack.c.b16 %v1723, %v1721
    %v1742 = vpack.c.b16 %v1724, %v1722
    %v1743 = vpack.c.b16 %v1727, %v1725
    %v1744 = vpack.c.b16 %v1728, %v1726
    %v1745 = vpack.c.b16 %v1731, %v1729
    %v1746 = vpack.c.b16 %v1732, %v1730
    %v1747 = vpack.c.b16 %v1735, %v1733
    %v1748 = vpack.c.b16 %v1736, %v1734
    %v1749 = vpack.c.b16 %v1739, %v1737
    %v1750 = vpack.c.b16 %v1740, %v1738
    %v1762 = vsel %vm1185, %v1699, 0
    %1764 = vmatpush.bf16.msra.mxu0 0
    %1765 = vmatpush.bf16.msra.mxu0 0
    %1766 = vmatpush.bf16.msra.mxu0 0
    %1767 = vmatpush.bf16.msra.mxu0 %v1749
    %1768 = vmatpush.bf16.msra.mxu0 %v1747
    %1769 = vmatpush.bf16.msra.mxu0 %v1745
    %1770 = vmatpush.bf16.msra.mxu0 %v1743
    %1771 = vmatpush.bf16.msra.mxu0 %v1741
    %1772 = vmatmul.bf16.gmra.mxu0 %v1762
    %v1773 = vpop.f32.mrf.mxu0
    %v1774 = vadd.f32 0.0, %v1773
    %v1775 = vpop.f32.mrf.mxu0
    %1776 = vdwg.mxu0
    %1777 = vmatpush.bf16.msra.mxu0 0
    %1778 = vmatpush.bf16.msra.mxu0 0
    %1779 = vmatpush.bf16.msra.mxu0 0
    %1780 = vmatpush.bf16.msra.mxu0 %v1750
    %1781 = vmatpush.bf16.msra.mxu0 %v1748
    %1782 = vmatpush.bf16.msra.mxu0 %v1746
    %1783 = vmatpush.bf16.msra.mxu0 %v1744
    %1784 = vmatpush.bf16.msra.mxu0 %v1742
    %1785 = vmatmul.bf16.gmra.mxu0 %v1762
    %v1786 = vpop.f32.mrf.mxu0
    %v1787 = vadd.f32 0.0, %v1786
    %v1788 = vpop.f32.mrf.mxu0
    %1789 = vdwg.mxu0
    %v1790 = vadd.f32 %v1672, %v1774
    %v1791 = vadd.f32 %v1673, %v1787
    %v1792 = vld [vmem:[%s9 + $0x4] sm:$0x3]
    %v1794 = vperm.slane %v1792, 0
    %v1795 = vperm.slane %v1792, 1
    %v1798 = vadd.f32 %v1790, %v1794
    %v1799 = vadd.f32 %v1791, %v1795
    %v1800 = vmax.f32 %v1798, 0.0
    %v1801 = vmax.f32 %v1799, 0.0
    %v1802 = vpack.c.bf16 %v1800, %v1800
    %v1803 = vpack.c.bf16 %v1801, %v1801
    %v1804 = vld [vmem:[%s7] sm:$0xf]
    %v1805 = vld [vmem:[%s7 + $0x4] sm:$0xf]
    %v1806 = vld [vmem:[%s7 + $0x8] sm:$0xf]
    %v1807 = vld [vmem:[%s7 + $0xc] sm:$0xf]
    %v1808 = vld [vmem:[%s7 + $0x10] sm:$0xf]
    %v1809 = vld [vmem:[%s7 + $0x14] sm:$0xf]
    %v1810 = vld [vmem:[%s7 + $0x18] sm:$0xf]
    %v1811 = vld [vmem:[%s7 + $0x1c] sm:$0xf]
    %v1812 = vld [vmem:[%s7 + $0x20] sm:$0xf]
    %v1813 = vld [vmem:[%s7 + $0x24] sm:$0xf]
    %v1814 = vld [vmem:[%s7 + $0x28] sm:$0xf]
    %v1815 = vld [vmem:[%s7 + $0x2c] sm:$0xf]
    %v1816 = vld [vmem:[%s7 + $0x30] sm:$0xf]
    %v1817 = vld [vmem:[%s7 + $0x34] sm:$0xf]
    %v1818 = vld [vmem:[%s7 + $0x38] sm:$0xf]
    %v1819 = vld [vmem:[%s7 + $0x3c] sm:$0xf]
    %v1820 = vld [vmem:[%s7 + $0x40] sm:$0xf]
    %v1821 = vld [vmem:[%s7 + $0x44] sm:$0xf]
    %v1822 = vld [vmem:[%s7 + $0x48] sm:$0xf]
    %v1823 = vld [vmem:[%s7 + $0x4c] sm:$0xf]
    %v1824 = vld [vmem:[%s7 + $0x50] sm:$0xf]
    %v1825 = vld [vmem:[%s7 + $0x54] sm:$0xf]
    %v1826 = vld [vmem:[%s7 + $0x58] sm:$0xf]
    %v1827 = vld [vmem:[%s7 + $0x5c] sm:$0xf]
    %v1828 = vld [vmem:[%s7 + $0x60] sm:$0xf]
    %v1829 = vld [vmem:[%s7 + $0x64] sm:$0xf]
    %v1830 = vld [vmem:[%s7 + $0x68] sm:$0xf]
    %v1831 = vld [vmem:[%s7 + $0x6c] sm:$0xf]
    %v1832 = vld [vmem:[%s7 + $0x70] sm:$0xf]
    %v1833 = vld [vmem:[%s7 + $0x74] sm:$0xf]
    %v1834 = vld [vmem:[%s7 + $0x78] sm:$0xf]
    %v1835 = vld [vmem:[%s7 + $0x7c] sm:$0xf]
    %v1836 = vld [vmem:[%s9 + $0x6] sm:$0x1]
    %v1838 = vperm.slane %v1836, 0
    %v1872 = vunpack.c.l.b16 %v1804
    %v1873 = vunpack.c.l.b16 %v1805
    %v1874 = vunpack.c.l.b16 %v1806
    %v1875 = vunpack.c.l.b16 %v1807
    %v1876 = vunpack.c.l.b16 %v1808
    %v1877 = vunpack.c.l.b16 %v1809
    %v1878 = vunpack.c.l.b16 %v1810
    %v1879 = vunpack.c.l.b16 %v1811
    %v1880 = vunpack.c.l.b16 %v1812
    %v1881 = vunpack.c.l.b16 %v1813
    %v1882 = vunpack.c.l.b16 %v1814
    %v1883 = vunpack.c.l.b16 %v1815
    %v1884 = vunpack.c.l.b16 %v1816
    %v1885 = vunpack.c.l.b16 %v1817
    %v1886 = vunpack.c.l.b16 %v1818
    %v1887 = vunpack.c.l.b16 %v1819
    %v1888 = vunpack.c.l.b16 %v1820
    %v1889 = vunpack.c.l.b16 %v1821
    %v1890 = vunpack.c.l.b16 %v1822
    %v1891 = vunpack.c.l.b16 %v1823
    %v1892 = vunpack.c.l.b16 %v1824
    %v1893 = vunpack.c.l.b16 %v1825
    %v1894 = vunpack.c.l.b16 %v1826
    %v1895 = vunpack.c.l.b16 %v1827
    %v1896 = vunpack.c.l.b16 %v1828
    %v1897 = vunpack.c.l.b16 %v1829
    %v1898 = vunpack.c.l.b16 %v1830
    %v1899 = vunpack.c.l.b16 %v1831
    %v1900 = vunpack.c.l.b16 %v1832
    %v1901 = vunpack.c.l.b16 %v1833
    %v1902 = vunpack.c.l.b16 %v1834
    %v1903 = vunpack.c.l.b16 %v1835
    %v1904 = vpack.c.b16 %v1873, %v1872
    %v1905 = vpack.c.b16 %v1875, %v1874
    %v1906 = vpack.c.b16 %v1877, %v1876
    %v1907 = vpack.c.b16 %v1879, %v1878
    %v1908 = vpack.c.b16 %v1881, %v1880
    %v1909 = vpack.c.b16 %v1883, %v1882
    %v1910 = vpack.c.b16 %v1885, %v1884
    %v1911 = vpack.c.b16 %v1887, %v1886
    %v1912 = vpack.c.b16 %v1889, %v1888
    %v1913 = vpack.c.b16 %v1891, %v1890
    %v1914 = vpack.c.b16 %v1893, %v1892
    %v1915 = vpack.c.b16 %v1895, %v1894
    %v1916 = vpack.c.b16 %v1897, %v1896
    %v1917 = vpack.c.b16 %v1899, %v1898
    %v1918 = vpack.c.b16 %v1901, %v1900
    %v1919 = vpack.c.b16 %v1903, %v1902
    %1936 = vmatpush.bf16.msra.mxu0 %v1911
    %1937 = vmatpush.bf16.msra.mxu0 %v1910
    %1938 = vmatpush.bf16.msra.mxu0 %v1909
    %1939 = vmatpush.bf16.msra.mxu0 %v1908
    %1940 = vmatpush.bf16.msra.mxu0 %v1907
    %1941 = vmatpush.bf16.msra.mxu0 %v1906
    %1942 = vmatpush.bf16.msra.mxu0 %v1905
    %1943 = vmatpush.bf16.msra.mxu0 %v1904
    %1944 = vmatmul.bf16.gmra.mxu0 %v1802
    %v1945 = vpop.f32.mrf.mxu0
    %v1946 = vadd.f32 %v1838, %v1945
    %v1947 = vpop.f32.mrf.mxu0
    %1948 = vdwg.mxu0
    %1949 = vmatpush.bf16.msra.mxu0 %v1919
    %1950 = vmatpush.bf16.msra.mxu0 %v1918
    %1951 = vmatpush.bf16.msra.mxu0 %v1917
    %1952 = vmatpush.bf16.msra.mxu0 %v1916
    %1953 = vmatpush.bf16.msra.mxu0 %v1915
    %1954 = vmatpush.bf16.msra.mxu0 %v1914
    %1955 = vmatpush.bf16.msra.mxu0 %v1913
    %1956 = vmatpush.bf16.msra.mxu0 %v1912
    %1957 = vmatmul.bf16.gmra.mxu0 %v1803
    %v1958 = vpop.f32.mrf.mxu0
    %v1959 = vadd.f32 %v1946, %v1958
    %v1960 = vpop.f32.mrf.mxu0
    %1961 = vdwg.mxu0
    %v1962 = vmax.f32 %v1959, 0.0
    %v1963 = vpack.c.bf16 %v1962, %v1962
    %v1964 = vld [vmem:[%s8] sm:$0xf]
    %v1965 = vld [vmem:[%s8 + $0x4] sm:$0xf]
    %v1966 = vld [vmem:[%s8 + $0x8] sm:$0xf]
    %v1967 = vld [vmem:[%s8 + $0xc] sm:$0xf]
    %v1968 = vld [vmem:[%s8 + $0x10] sm:$0xf]
    %v1969 = vld [vmem:[%s8 + $0x14] sm:$0xf]
    %v1970 = vld [vmem:[%s8 + $0x18] sm:$0xf]
    %v1971 = vld [vmem:[%s8 + $0x1c] sm:$0xf]
    %v1972 = vld [vmem:[%s8 + $0x20] sm:$0xf]
    %v1973 = vld [vmem:[%s8 + $0x24] sm:$0xf]
    %v1974 = vld [vmem:[%s8 + $0x28] sm:$0xf]
    %v1975 = vld [vmem:[%s8 + $0x2c] sm:$0xf]
    %v1976 = vld [vmem:[%s8 + $0x30] sm:$0xf]
    %v1977 = vld [vmem:[%s8 + $0x34] sm:$0xf]
    %v1978 = vld [vmem:[%s8 + $0x38] sm:$0xf]
    %v1979 = vld [vmem:[%s8 + $0x3c] sm:$0xf]
    %v1980 = vld [vmem:[%s9 + $0x7] sm:$0x1]
    %v1982 = vperm.slane %v1980, 0
    %v2000 = vunpack.c.l.b16 %v1964
    %v2001 = vunpack.c.l.b16 %v1965
    %v2002 = vunpack.c.l.b16 %v1966
    %v2003 = vunpack.c.l.b16 %v1967
    %v2004 = vunpack.c.l.b16 %v1968
    %v2005 = vunpack.c.l.b16 %v1969
    %v2006 = vunpack.c.l.b16 %v1970
    %v2007 = vunpack.c.l.b16 %v1971
    %v2008 = vunpack.c.l.b16 %v1972
    %v2009 = vunpack.c.l.b16 %v1973
    %v2010 = vunpack.c.l.b16 %v1974
    %v2011 = vunpack.c.l.b16 %v1975
    %v2012 = vunpack.c.l.b16 %v1976
    %v2013 = vunpack.c.l.b16 %v1977
    %v2014 = vunpack.c.l.b16 %v1978
    %v2015 = vunpack.c.l.b16 %v1979
    %v2016 = vpack.c.b16 %v2001, %v2000
    %v2017 = vpack.c.b16 %v2003, %v2002
    %v2018 = vpack.c.b16 %v2005, %v2004
    %v2019 = vpack.c.b16 %v2007, %v2006
    %v2020 = vpack.c.b16 %v2009, %v2008
    %v2021 = vpack.c.b16 %v2011, %v2010
    %v2022 = vpack.c.b16 %v2013, %v2012
    %v2023 = vpack.c.b16 %v2015, %v2014
    %2032 = vmatpush.bf16.msra.mxu0 %v2023
    %2033 = vmatpush.bf16.msra.mxu0 %v2022
    %2034 = vmatpush.bf16.msra.mxu0 %v2021
    %2035 = vmatpush.bf16.msra.mxu0 %v2020
    %2036 = vmatpush.bf16.msra.mxu0 %v2019
    %2037 = vmatpush.bf16.msra.mxu0 %v2018
    %2038 = vmatpush.bf16.msra.mxu0 %v2017
    %2039 = vmatpush.bf16.msra.mxu0 %v2016
    %2040 = vmatmul.bf16.gmra.mxu0 %v1963
    %v2041 = vpop.f32.mrf.mxu0
    %v2042 = vadd.f32 %v1982, %v2041
    %v2043 = vpop.f32.mrf.mxu0
    %2044 = vdwg.mxu0
    %2045 = vst [vmem:[#allocation7] sm:$0x3] %v2042
    // Predicated region
    $region42: #{simple_conv_forward.1} parent=1 // pred_check
      _
    $region43: #{simple_conv_forward.1} parent=1 // pred_check_branch
      %2047 = sbr.rel (0) target = $region45
    $region44: #{simple_conv_forward.1} parent=1 // pred_region
      %2049 = vsyncadd [#allocation8], 0
      %s2051 = sshll.u32 [#allocation7], 4
      %s2052 = int_to_ptr.vmem [resolvable:$true] %s2051
      %s2053 = sshll.u32 %s10, 4
      %s2054 = int_to_ptr.hbm [resolvable:$true] %s2053
      %2056 = dma.vmem_to_hbm [thread:$0]  %s2052, 32, %s2054, [#allocation8]
    $region45: #{simple_conv_forward.1} parent=1 // pred_fallthru
      _
    // Predicated region
    $region46: #{simple_conv_forward.1} parent=1 // pred_check
      _
    $region47: #{simple_conv_forward.1} parent=1 // pred_check_branch
      %2058 = sbr.rel (0) target = $region49
    $region48: #{simple_conv_forward.1} parent=1 // pred_region
      %2060 = dma.done [#allocation8], 32
    $region49: #{simple_conv_forward.1} parent=1 // pred_fallthru
      _
    %2061 = vsyncpa [#allocation8], 1

</llo_original>
